<compile_context>
chip_gen: v7x
topology: tpu7x:2x2x1
jax: 0.10.0
libtpu: 0.0.40
codegen_flags: <defaults>
</compile_context>

<pallas_src>
import functools

import jax
import jax.numpy as jnp
from jax.experimental import pallas as pl
from jax.experimental.pallas import tpu as pltpu

BN_EPS = 1e-5


def _round_up(x, m):
    return (x + m - 1) // m * m


@functools.lru_cache(maxsize=None)
def _vmem_capacity_bytes():
    """Physical per-core VMEM (v5e/v6e: 128 MiB, v7x: 64 MiB/TC)."""
    try:
        info = pltpu.get_tpu_info()
        for name in ("vmem_capacity_bytes", "vmem_size_bytes", "vmem_bytes"):
            val = getattr(info, name, None)
            if val:
                return int(val)
    except Exception:
        pass
    return 64 * 1024 * 1024  # conservative fallback (smallest modern = v7x)


@functools.lru_cache(maxsize=None)
def _complex_bitcast_ok():
    """Probe (eagerly, once) whether complex64 -> interleaved-f32 bitcast works."""
    try:
        z = jax.lax.bitcast_convert_type(
            jnp.array([1.0 + 2.0j, 3.0 + 4.0j], dtype=jnp.complex64), jnp.float32)
        return bool(jnp.allclose(z.reshape(-1),
                                 jnp.array([1.0, 2.0, 3.0, 4.0], jnp.float32)))
    except Exception:
        return False


def _complex_to_interleaved(z):
    """(..., C) complex64 -> (..., 2C) f32 ordered [re0, im0, re1, im1, ...]
    (exactly the PyTorch FourierUnit channel order).  Free bitcast view when
    supported; otherwise a single fused stack copy."""
    if _complex_bitcast_ok():
        ri = jax.lax.bitcast_convert_type(z, jnp.float32)       # (..., C, 2)
    else:
        ri = jnp.stack([jnp.real(z), jnp.imag(z)], axis=-1)     # (..., C, 2)
    return ri.reshape(*z.shape[:-1], z.shape[-1] * 2)


# ----------------------------------------------------------------------------
# Pallas kernels
# ----------------------------------------------------------------------------
def _bn_stats_kernel(x_ref, w_ref, sum_ref, sq_ref, *, m_rows, tile_m, inv_m):
    """Pass 1: per-tile partial BatchNorm moments of y = x @ w.

    Every grid step writes its own (1, 8, N_pad) partial block, so the grid
    axis is fully parallel (both v7x TensorCores participate).  Rows beyond
    the true M (last-tile overhang; the input is NOT padded in HBM) are
    masked to zero BEFORE the matmul, so they never perturb the statistics.
    Partials are pre-scaled by 1/M so the wrapper accumulates E[y] / E[y^2]
    directly (smaller magnitudes -> less cancellation forming the variance).
    """
    i = pl.program_id(0)
    rows = i * tile_m + jax.lax.broadcasted_iota(jnp.int32, x_ref.shape, 0)
    x = jnp.where(rows < m_rows, x_ref[...], 0.0).astype(jnp.bfloat16)
    y = jnp.dot(x, w_ref[...], preferred_element_type=jnp.float32)
    s = jnp.sum(y, axis=0, keepdims=True) * inv_m               # (1, N_pad)
    q = jnp.sum(y * y, axis=0, keepdims=True) * inv_m           # (1, N_pad)
    sum_ref[...] = jnp.broadcast_to(s[None], sum_ref.shape)
    sq_ref[...] = jnp.broadcast_to(q[None], sq_ref.shape)


def _conv_bn_relu_kernel(x_ref, w_ref, scale_ref, shift_ref, o_ref):
    """Pass 2: fused 1x1 conv (matmul) + BN affine + ReLU on one M tile.
    Output stored as bf16: halves the dominant HBM writeback stream and the
    output-tile VMEM footprint (out-of-bounds rows of the last tile are
    discarded by the pipeline)."""
    x = x_ref[...].astype(jnp.bfloat16)
    y = jnp.dot(x, w_ref[...], preferred_element_type=jnp.float32)
    o_ref[...] = jnp.maximum(y * scale_ref[...] + shift_ref[...],
                             0.0).astype(o_ref.dtype)


# ----------------------------------------------------------------------------
# Tiling / VMEM budgeting
# ----------------------------------------------------------------------------
def _pick_tiling(M, K_eff, N_pad, tile_m):
    vmem_cap = _vmem_capacity_bytes()
    # Raise the scoped-VMEM limit towards physical capacity, leaving headroom
    # for Mosaic internal scratch (v6e/v5e: ~100 MiB, v7x: ~50 MiB).
    vmem_limit = int(min(vmem_cap - (8 << 20), vmem_cap * 78 // 100))
    vmem_limit = max(vmem_limit, 32 << 20)

    if tile_m is None:
        budget = vmem_limit * 85 // 100
        # Double-buffered f32 input tile + double-buffered bf16 output tile
        # dominate; weight / scale / shift blocks are small & grid-invariant.
        row_bytes = 2 * K_eff * 4 + 2 * N_pad * 2
        fixed = 2 * K_eff * N_pad * 2 + 8 * N_pad * 4 + (1 << 20)
        tile_m = max(256, (budget - fixed) // row_bytes)
        tile_m = min(tile_m, 8192)
        tile_m -= tile_m % 256

    tile_m = max(8, _round_up(int(tile_m), 8))
    tile_m = min(tile_m, _round_up(M, 8))
    n_tiles = int(pl.cdiv(M, tile_m))
    return tile_m, n_tiles, vmem_limit


# ----------------------------------------------------------------------------
# Forward
# ----------------------------------------------------------------------------
def fourier_unit_forward(x, conv_weight, bn_gamma, bn_beta, *,
                         fft_norm="ortho", tile_m=None):
    """FourierUnit.forward with module defaults: groups=1,
    spatial_scale_factor=None, spectral_pos_encoding=False, use_se=False,
    ffc3d=False.  BatchNorm uses training-mode batch statistics."""
    B, C, H, W = x.shape
    N = conv_weight.shape[0]                    # 2 * out_channels
    C_out = N // 2
    K = 2 * C

    # ---- spectral transform -------------------------------------------------
    # TODO(synk): rfft2 / irfft2 have no Pallas TPU primitive; kept as jnp.fft.
    ff = jnp.fft.rfft2(x, norm=fft_norm)                    # (B, C, H, Wf) c64
    Wf = ff.shape[-1]
    M = B * H * Wf
    ff_cl = jnp.transpose(ff, (0, 2, 3, 1))                 # (B, H, Wf, C)
    x_mat = _complex_to_interleaved(ff_cl).reshape(M, K)    # f32, PyTorch order

    # Weight columns already match the PyTorch channel order -> no permutes.
    w_mat = conv_weight[:, :, 0, 0].T.astype(jnp.float32)   # (K, N)

    # ---- lane padding (only when the channel count is not lane-aligned) ----
    N_pad = _round_up(N, 128)
    if K % 128 == 0:
        K_eff, x_in = K, x_mat                 # common FFC case: zero-copy
    else:
        K_eff = _round_up(K, 128)
        x_in = jnp.pad(x_mat, ((0, 0), (0, K_eff - K)))
    w_in = jnp.pad(w_mat, ((0, K_eff - K), (0, N_pad - N))).astype(jnp.bfloat16)

    tile_m, n_tiles, vmem_limit = _pick_tiling(M, K_eff, N_pad, tile_m)

    x_spec = pl.BlockSpec((tile_m, K_eff), lambda i: (i, 0))
    w_spec = pl.BlockSpec((K_eff, N_pad), lambda i: (0, 0))        # invariant
    vec_spec = pl.BlockSpec((1, N_pad), lambda i: (0, 0))          # invariant
    part_spec = pl.BlockSpec((1, 8, N_pad), lambda i: (i, 0, 0))   # per-tile

    # Pass 1: per-tile partial BN moments (fully parallel grid).
    sum_part, sq_part = pl.pallas_call(
        functools.partial(_bn_stats_kernel, m_rows=M, tile_m=tile_m,
                          inv_m=1.0 / M),
        out_shape=(jax.ShapeDtypeStruct((n_tiles, 8, N_pad), jnp.float32),
                   jax.ShapeDtypeStruct((n_tiles, 8, N_pad), jnp.float32)),
        grid_spec=pltpu.PrefetchScalarGridSpec(
            num_scalar_prefetch=0,
            grid=(n_tiles,),
            in_specs=[x_spec, w_spec],
            out_specs=(part_spec, part_spec)),
        compiler_params=pltpu.CompilerParams(
            dimension_semantics=("parallel",),
            vmem_limit_bytes=vmem_limit),
    )(x_in, w_in)

    # Finalize BN scale / shift from the tiny partials in f32 (wrapper side).
    ey = jnp.sum(sum_part[:, 0, :], axis=0)                  # E[y]   (N_pad,)
    ey2 = jnp.sum(sq_part[:, 0, :], axis=0)                  # E[y^2] (N_pad,)
    var = jnp.maximum(ey2 - ey * ey, 0.0)
    gamma_pad = jnp.pad(bn_gamma.astype(jnp.float32), (0, N_pad - N))
    beta_pad = jnp.pad(bn_beta.astype(jnp.float32), (0, N_pad - N))
    scale = (gamma_pad * jax.lax.rsqrt(var + BN_EPS)).reshape(1, N_pad)
    shift = (beta_pad - ey * scale[0]).reshape(1, N_pad)

    # Pass 2: tiled matmul + BN affine + ReLU, bf16 output.  Tiles are
    # independent -> "parallel" grid; tiles are large, so the default 2-deep
    # BlockSpec double-buffering is kept.
    y_flat = pl.pallas_call(
        _conv_bn_relu_kernel,
        out_shape=jax.ShapeDtypeStruct((M, N_pad), jnp.bfloat16),
        grid_spec=pltpu.PrefetchScalarGridSpec(
            num_scalar_prefetch=0,
            grid=(n_tiles,),
            in_specs=[x_spec, w_spec, vec_spec, vec_spec],
            out_specs=pl.BlockSpec((tile_m, N_pad), lambda i: (i, 0))),
        compiler_params=pltpu.CompilerParams(
            dimension_semantics=("parallel",),
            vmem_limit_bytes=vmem_limit),
    )(x_in, w_in, scale, shift)

    # ---- back to complex NCHW and inverse FFT -------------------------------
    y = y_flat[:, :N].astype(jnp.float32).reshape(B, H, Wf, C_out, 2)
    y_c = jax.lax.complex(y[..., 0], y[..., 1])              # (B, H, Wf, C_out)
    y_c = jnp.transpose(y_c, (0, 3, 1, 2))                   # (B, C_out, H, Wf)
    return jnp.fft.irfft2(y_c, s=(H, W), norm=fft_norm)


# ----------------------------------------------------------------------------
# Pure-JAX reference (mirrors the PyTorch module) and self-test
# ----------------------------------------------------------------------------
def _reference_forward(x, conv_weight, bn_gamma, bn_beta, fft_norm="ortho"):
    B, C, H, W = x.shape
    C_out = conv_weight.shape[0] // 2
    ff = jnp.fft.rfft2(x, norm=fft_norm)
    Wf = ff.shape[-1]
    ri = jnp.stack([ff.real, ff.imag], axis=2).reshape(B, 2 * C, H, Wf)
    w = conv_weight[:, :, 0, 0]                              # (2*C_out, 2*C)
    y = jnp.einsum("nk,bkhw->bnhw", w, ri)
    mean = y.mean(axis=(0, 2, 3), keepdims=True)
    var = jnp.mean((y - mean) ** 2, axis=(0, 2, 3), keepdims=True)
    y = (y - mean) * jax.lax.rsqrt(var + BN_EPS)
    y = y * bn_gamma.reshape(1, -1, 1, 1) + bn_beta.reshape(1, -1, 1, 1)
    y = jnp.maximum(y, 0.0)
    y = y.reshape(B, C_out, 2, H, Wf)
    y_c = jax.lax.complex(y[:, :, 0], y[:, :, 1])
    return jnp.fft.irfft2(y_c, s=(H, W), norm=fft_norm)


def _run_case(B, C_in, C_out, H, W, tile_m, key):
    kx, kw, kg, kb = jax.random.split(key, 4)
    x = jax.random.normal(kx, (B, C_in, H, W), dtype=jnp.float32)
    fan_in = 2 * C_in
    conv_weight = jax.random.normal(
        kw, (2 * C_out, 2 * C_in, 1, 1), dtype=jnp.float32) / jnp.sqrt(fan_in)
    bn_gamma = 1.0 + 0.1 * jax.random.normal(kg, (2 * C_out,), dtype=jnp.float32)
    bn_beta = 0.1 * jax.random.normal(kb, (2 * C_out,), dtype=jnp.float32)

    fwd = jax.jit(fourier_unit_forward, static_argnames=("fft_norm", "tile_m"))
    out = fwd(x, conv_weight, bn_gamma, bn_beta, tile_m=tile_m)
    jax.block_until_ready(out)
    assert out.shape == (B, C_out, H, W), out.shape

    ref = _reference_forward(x, conv_weight, bn_gamma, bn_beta)
    max_err = float(jnp.max(jnp.abs(out - ref)))
    assert max_err < 5e-2, f"max |err| = {max_err}"
    return max_err


if __name__ == "__main__":
    key = jax.random.PRNGKey(0)
    k1, k2 = jax.random.split(key)

    # Small non-lane-aligned case (K=N=8 -> padded path) with a small explicit
    # tile so the multi-tile grid and the last-tile OOB-row masking are
    # exercised (M = 2*16*9 = 288 rows -> 3 tiles of 128).
    _run_case(2, 4, 4, 16, 16, 128, k1)

    # Lane-aligned case (K=N=128 -> zero-copy fast path) with the VMEM-budget
    # derived tile size (auto).
    _run_case(2, 64, 64, 16, 16, None, k2)

    print("KERNEL_OK")
</pallas_src>

<mosaic_0001>
module attributes {stable_mosaic.version = 11 : i64} {
  func.func @_conv_bn_relu_kernel(%arg0: i32, %arg1: memref<128x128xf32, #tpu.memory_space<vmem>>, %arg2: memref<128x128xbf16, #tpu.memory_space<vmem>>, %arg3: memref<1x128xf32, #tpu.memory_space<vmem>>, %arg4: memref<1x128xf32, #tpu.memory_space<vmem>>, %arg5: memref<128x128xbf16, #tpu.memory_space<vmem>>) attributes {dimension_semantics = [#tpu.dimension_semantics<parallel>], iteration_bounds = array<i64: 3>, scalar_prefetch = 0 : i64, scratch_operands = 0 : i64, tpu.core_type = #tpu.core_type<tc>, window_params = [{transform_indices = @transform_0, window_bounds = array<i64: 128, 128>}, {pipeline_mode = #tpu.pipeline_mode<synchronous>, transform_indices = @transform_1, window_bounds = array<i64: 128, 128>}, {pipeline_mode = #tpu.pipeline_mode<synchronous>, transform_indices = @transform_2, window_bounds = array<i64: 1, 128>}, {pipeline_mode = #tpu.pipeline_mode<synchronous>, transform_indices = @transform_3, window_bounds = array<i64: 1, 128>}, {transform_indices = @transform_4, window_bounds = array<i64: 128, 128>}]} {
    %c0 = arith.constant 0 : index
    %c0_0 = arith.constant 0 : index
    %0 = vector.load %arg1[%c0, %c0_0] : memref<128x128xf32, #tpu.memory_space<vmem>>, vector<128x128xf32>
    %1 = arith.truncf %0 : vector<128x128xf32> to vector<128x128xbf16>
    %c0_1 = arith.constant 0 : index
    %c0_2 = arith.constant 0 : index
    %2 = vector.load %arg2[%c0_1, %c0_2] : memref<128x128xbf16, #tpu.memory_space<vmem>>, vector<128x128xbf16>
    %cst = arith.constant dense<0.000000e+00> : vector<128x128xf32>
    %3 = tpu.matmul %1, %2, %cst {dimension_numbers = #tpu.dot_dimension_numbers<[1], [0], [0], [1], [0, 0, 1, 1], [], []>} : vector<128x128xbf16>, vector<128x128xbf16>, vector<128x128xf32> -> vector<128x128xf32>
    %c0_3 = arith.constant 0 : index
    %c0_4 = arith.constant 0 : index
    %4 = vector.load %arg3[%c0_3, %c0_4] : memref<1x128xf32, #tpu.memory_space<vmem>>, vector<1x128xf32>
    %5 = vector.broadcast %4 : vector<1x128xf32> to vector<128x128xf32>
    %6 = arith.mulf %3, %5 : vector<128x128xf32>
    %c0_5 = arith.constant 0 : index
    %c0_6 = arith.constant 0 : index
    %7 = vector.load %arg4[%c0_5, %c0_6] : memref<1x128xf32, #tpu.memory_space<vmem>>, vector<1x128xf32>
    %8 = vector.broadcast %7 : vector<1x128xf32> to vector<128x128xf32>
    %9 = arith.addf %6, %8 : vector<128x128xf32>
    %cst_7 = arith.constant 0.000000e+00 : f32
    %10 = vector.broadcast %cst_7 : f32 to vector<128x128xf32>
    %11 = arith.maximumf %9, %10 : vector<128x128xf32>
    %12 = arith.truncf %11 : vector<128x128xf32> to vector<128x128xbf16>
    %c0_8 = arith.constant 0 : index
    %c0_9 = arith.constant 0 : index
    %13 = vector.load %arg5[%c0_8, %c0_9] : memref<128x128xbf16, #tpu.memory_space<vmem>>, vector<128x128xbf16>
    tpu.vector_store %arg5[%c0_8, %c0_9], %12 {strides = array<i32>} : memref<128x128xbf16, #tpu.memory_space<vmem>>, vector<128x128xbf16>,
    return
  }
  func.func @transform_0(%arg0: i32) -> (i32, i32) {
    %c0_i32 = arith.constant 0 : i32
    %c0_i32_0 = arith.constant 0 : i32
    return %arg0, %c0_i32 : i32, i32
  }
  func.func @transform_1(%arg0: i32) -> (i32, i32) {
    %c0_i32 = arith.constant 0 : i32
    %c0_i32_0 = arith.constant 0 : i32
    %c0_i32_1 = arith.constant 0 : i32
    return %c0_i32, %c0_i32_0 : i32, i32
  }
  func.func @transform_2(%arg0: i32) -> (i32, i32) {
    %c0_i32 = arith.constant 0 : i32
    %c0_i32_0 = arith.constant 0 : i32
    %c0_i32_1 = arith.constant 0 : i32
    return %c0_i32, %c0_i32_0 : i32, i32
  }
  func.func @transform_3(%arg0: i32) -> (i32, i32) {
    %c0_i32 = arith.constant 0 : i32
    %c0_i32_0 = arith.constant 0 : i32
    %c0_i32_1 = arith.constant 0 : i32
    return %c0_i32, %c0_i32_0 : i32, i32
  }
  func.func @transform_4(%arg0: i32) -> (i32, i32) {
    %c0_i32 = arith.constant 0 : i32
    %c0_i32_0 = arith.constant 0 : i32
    return %arg0, %c0_i32 : i32, i32
  }
}

module attributes {stable_mosaic.version = 11 : i64} {
  func.func @_bn_stats_kernel(%arg0: i32, %arg1: memref<128x128xf32, #tpu.memory_space<vmem>>, %arg2: memref<128x128xbf16, #tpu.memory_space<vmem>>, %arg3: memref<1x8x128xf32, #tpu.memory_space<vmem>>, %arg4: memref<1x8x128xf32, #tpu.memory_space<vmem>>) attributes {dimension_semantics = [#tpu.dimension_semantics<parallel>], iteration_bounds = array<i64: 3>, scalar_prefetch = 0 : i64, scratch_operands = 0 : i64, tpu.core_type = #tpu.core_type<tc>, window_params = [{transform_indices = @transform_0, window_bounds = array<i64: 128, 128>}, {pipeline_mode = #tpu.pipeline_mode<synchronous>, transform_indices = @transform_1, window_bounds = array<i64: 128, 128>}, {transform_indices = @transform_2, window_bounds = array<i64: 1, 8, 128>}, {transform_indices = @transform_3, window_bounds = array<i64: 1, 8, 128>}]} {
    %c128_i32 = arith.constant 128 : i32
    %0 = arith.muli %arg0, %c128_i32 : i32
    %1 = tpu.iota {dimensions = array<i32: 0>} : vector<128x128xi32>
    %2 = vector.broadcast %0 : i32 to vector<128x128xi32>
    %3 = arith.addi %2, %1 : vector<128x128xi32>
    %c288_i32 = arith.constant 288 : i32
    %4 = vector.broadcast %c288_i32 : i32 to vector<128x128xi32>
    %5 = arith.cmpi slt, %3, %4 : vector<128x128xi32>
    %c0 = arith.constant 0 : index
    %c0_0 = arith.constant 0 : index
    %6 = vector.load %arg1[%c0, %c0_0] : memref<128x128xf32, #tpu.memory_space<vmem>>, vector<128x128xf32>
    %cst = arith.constant 0.000000e+00 : f32
    %7 = vector.broadcast %cst : f32 to vector<128x128xf32>
    %8 = arith.select %5, %6, %7 : vector<128x128xi1>, vector<128x128xf32>
    %9 = arith.truncf %8 : vector<128x128xf32> to vector<128x128xbf16>
    %c0_1 = arith.constant 0 : index
    %c0_2 = arith.constant 0 : index
    %10 = vector.load %arg2[%c0_1, %c0_2] : memref<128x128xbf16, #tpu.memory_space<vmem>>, vector<128x128xbf16>
    %cst_3 = arith.constant dense<0.000000e+00> : vector<128x128xf32>
    %11 = tpu.matmul %9, %10, %cst_3 {dimension_numbers = #tpu.dot_dimension_numbers<[1], [0], [0], [1], [0, 0, 1, 1], [], []>} : vector<128x128xbf16>, vector<128x128xbf16>, vector<128x128xf32> -> vector<128x128xf32>
    %cst_4 = arith.constant dense<0.000000e+00> : vector<128xf32>
    %12 = vector.multi_reduction <add>, %11, %cst_4 [0] : vector<128x128xf32> to vector<128xf32>
    %13 = vector.shape_cast %12 : vector<128xf32> to vector<1x128xf32>
    %cst_5 = arith.constant 0.00347222225 : f32
    %14 = vector.broadcast %cst_5 : f32 to vector<1x128xf32>
    %15 = arith.mulf %13, %14 : vector<1x128xf32>
    %16 = arith.mulf %11, %11 : vector<128x128xf32>
    %cst_6 = arith.constant dense<0.000000e+00> : vector<128xf32>
    %17 = vector.multi_reduction <add>, %16, %cst_6 [0] : vector<128x128xf32> to vector<128xf32>
    %18 = vector.shape_cast %17 : vector<128xf32> to vector<1x128xf32>
    %cst_7 = arith.constant 0.00347222225 : f32
    %19 = vector.broadcast %cst_7 : f32 to vector<1x128xf32>
    %20 = arith.mulf %18, %19 : vector<1x128xf32>
    %21 = vector.shape_cast %15 : vector<1x128xf32> to vector<1x1x128xf32>
    %22 = vector.shape_cast %21 : vector<1x1x128xf32> to vector<1x1x128xf32>
    %23 = vector.broadcast %22 : vector<1x1x128xf32> to vector<1x8x128xf32>
    %c0_8 = arith.constant 0 : index
    %c0_9 = arith.constant 0 : index
    %c0_10 = arith.constant 0 : index
    %24 = vector.load %arg3[%c0_8, %c0_9, %c0_10] : memref<1x8x128xf32, #tpu.memory_space<vmem>>, vector<1x8x128xf32>
    tpu.vector_store %arg3[%c0_8, %c0_9, %c0_10], %23 {strides = array<i32>} : memref<1x8x128xf32, #tpu.memory_space<vmem>>, vector<1x8x128xf32>,
    %25 = vector.shape_cast %20 : vector<1x128xf32> to vector<1x1x128xf32>
    %26 = vector.shape_cast %25 : vector<1x1x128xf32> to vector<1x1x128xf32>
    %27 = vector.broadcast %26 : vector<1x1x128xf32> to vector<1x8x128xf32>
    %c0_11 = arith.constant 0 : index
    %c0_12 = arith.constant 0 : index
    %c0_13 = arith.constant 0 : index
    %28 = vector.load %arg4[%c0_11, %c0_12, %c0_13] : memref<1x8x128xf32, #tpu.memory_space<vmem>>, vector<1x8x128xf32>
    tpu.vector_store %arg4[%c0_11, %c0_12, %c0_13], %27 {strides = array<i32>} : memref<1x8x128xf32, #tpu.memory_space<vmem>>, vector<1x8x128xf32>,
    return
  }
  func.func @transform_0(%arg0: i32) -> (i32, i32) {
    %c0_i32 = arith.constant 0 : i32
    %c0_i32_0 = arith.constant 0 : i32
    return %arg0, %c0_i32 : i32, i32
  }
  func.func @transform_1(%arg0: i32) -> (i32, i32) {
    %c0_i32 = arith.constant 0 : i32
    %c0_i32_0 = arith.constant 0 : i32
    %c0_i32_1 = arith.constant 0 : i32
    return %c0_i32, %c0_i32_0 : i32, i32
  }
  func.func @transform_2(%arg0: i32) -> (i32, i32, i32) {
    %c0_i32 = arith.constant 0 : i32
    %c0_i32_0 = arith.constant 0 : i32
    %c0_i32_1 = arith.constant 0 : i32
    return %arg0, %c0_i32, %c0_i32_0 : i32, i32, i32
  }
  func.func @transform_3(%arg0: i32) -> (i32, i32, i32) {
    %c0_i32 = arith.constant 0 : i32
    %c0_i32_0 = arith.constant 0 : i32
    %c0_i32_1 = arith.constant 0 : i32
    return %arg0, %c0_i32, %c0_i32_0 : i32, i32, i32
  }
}

</mosaic_0001>

<llo_original>
// kernel: reverse.0
$region0: #{reverse.0}
  %s0 = inlined_call_operand.vmem [shape: f32[2,4,16,7], index: 0, kind: input, shape index: {}]
  %s1 = inlined_call_operand.vmem [shape: f32[2,4,16,7], index: 1, kind: output, shape index: {}]
  $region1: #{reverse.0} parent=0
    #allocation0 [shape = 'u8[65536]{0}', space=vmem, size = 0x10000, scoped, tag = 'operand span for operand 0']
    #allocation1 [shape = 'u8[32768]{0}', space=vmem, size = 0x8000, scoped, tag = 'operand span for operand 1']
    %s2 = scalar_lea.vmem [#allocation0], 8
    // Predicated region
    $region2: #{reverse.0} parent=1 // pred_check
      _
    $region3: #{reverse.0} parent=1 // pred_check_branch
      %4 = sbr.rel (0) target = $region5
    $region4: #{reverse.0} parent=1 // pred_region
      // Predicated region
      $region6: #{reverse.0} parent=4 // pred_check
        _
      $region7: #{reverse.0} parent=4 // pred_check_branch
        %6 = sbr.rel (0) target = $region9
      $region8: #{reverse.0} parent=4 // pred_region
        // Predicated region
        $region21: #{reverse.0} parent=8 // pred_check
          _
        $region22: #{reverse.0} parent=8 // pred_check_branch
          %35 = sbr.rel (0) target = $region24
        $region23: #{reverse.0} parent=8 // pred_region
          loop: start=0, step=1, limit=1
          $region25: #{reverse.0} parent=23 // loop_pre_header
            _
          $region26: #{reverse.0} parent=23 // loop_header
            %s37 = sphi 0, %s41
            %p38 = scmp.ge.s32.totalorder %s37, 1
            %s42 = sphi %s0, %s0
            %s43 = sphi %s2, %s2
          $region27: #{reverse.0} parent=23 // loop_header_branch
            %40 = sbr.rel (%p38) target = $region31
          $region28: #{reverse.0} parent=23 // loop_body
            %v44 = vld [vmem:[%s42] sm:$0xff]
            %45 = vst [vmem:[%s43] sm:$0xff] %v44
            %v46 = vld [vmem:[%s42 + $0x8] sm:$0xff]
            %47 = vst [vmem:[%s43 + $0x10] sm:$0xff] %v46
            %v48 = vld [vmem:[%s42 + $0x10] sm:$0xff]
            %49 = vst [vmem:[%s43 + $0x20] sm:$0xff] %v48
            %v50 = vld [vmem:[%s42 + $0x18] sm:$0xff]
            %51 = vst [vmem:[%s43 + $0x30] sm:$0xff] %v50
            %v52 = vld [vmem:[%s42 + $0x20] sm:$0xff]
            %53 = vst [vmem:[%s43 + $0x40] sm:$0xff] %v52
            %v54 = vld [vmem:[%s42 + $0x28] sm:$0xff]
            %55 = vst [vmem:[%s43 + $0x50] sm:$0xff] %v54
            %v56 = vld [vmem:[%s42 + $0x30] sm:$0xff]
            %57 = vst [vmem:[%s43 + $0x60] sm:$0xff] %v56
            %v58 = vld [vmem:[%s42 + $0x38] sm:$0xff]
            %59 = vst [vmem:[%s43 + $0x70] sm:$0xff] %v58
          $region29: #{reverse.0} parent=23 // loop_footer
            %s41 = sadd.s32 1, %s37
          $region30: #{reverse.0} parent=23 // loop_footer_branch
            %36 = sbr.rel target = $region26
          $region31: #{reverse.0} parent=23 // loop_exit
            _
        $region24: #{reverse.0} parent=8 // pred_fallthru
          _
        // Predicated region
        $region32: #{reverse.0} parent=8 // pred_check
          _
        $region33: #{reverse.0} parent=8 // pred_check_branch
          %61 = sbr.rel target = $region35
        $region34: #{reverse.0} parent=8 // pred_region
          _
        $region35: #{reverse.0} parent=8 // pred_fallthru
          _
      $region9: #{reverse.0} parent=4 // pred_fallthru
        _
      // Predicated region
      $region10: #{reverse.0} parent=4 // pred_check
        _
      $region11: #{reverse.0} parent=4 // pred_check_branch
        %8 = sbr.rel target = $region13
      $region12: #{reverse.0} parent=4 // pred_region
        loop: start=0, step=1, limit=1
        $region14: #{reverse.0} parent=12 // loop_pre_header
          _
        $region15: #{reverse.0} parent=12 // loop_header
          %s11 = sphi 0, %s15
          %p12 = scmp.ge.s32.totalorder %s11, 1
          %s16 = sphi %s0, %s0
          %s17 = sphi %s2, %s2
        $region16: #{reverse.0} parent=12 // loop_header_branch
          %14 = sbr.rel (%p12) target = $region20
        $region17: #{reverse.0} parent=12 // loop_body
          %v18 = vld [vmem:[%s16] sm:$0xff]
          %19 = vst [vmem:[%s17] sm:$0xff] %v18
          %v20 = vld [vmem:[%s16 + $0x8] sm:$0xff]
          %21 = vst [vmem:[%s17 + $0x10] sm:$0xff] %v20
          %v22 = vld [vmem:[%s16 + $0x10] sm:$0xff]
          %23 = vst [vmem:[%s17 + $0x20] sm:$0xff] %v22
          %v24 = vld [vmem:[%s16 + $0x18] sm:$0xff]
          %25 = vst [vmem:[%s17 + $0x30] sm:$0xff] %v24
          %v26 = vld [vmem:[%s16 + $0x20] sm:$0xff]
          %27 = vst [vmem:[%s17 + $0x40] sm:$0xff] %v26
          %v28 = vld [vmem:[%s16 + $0x28] sm:$0xff]
          %29 = vst [vmem:[%s17 + $0x50] sm:$0xff] %v28
          %v30 = vld [vmem:[%s16 + $0x30] sm:$0xff]
          %31 = vst [vmem:[%s17 + $0x60] sm:$0xff] %v30
          %v32 = vld [vmem:[%s16 + $0x38] sm:$0xff]
          %33 = vst [vmem:[%s17 + $0x70] sm:$0xff] %v32
        $region18: #{reverse.0} parent=12 // loop_footer
          %s15 = sadd.s32 1, %s11
        $region19: #{reverse.0} parent=12 // loop_footer_branch
          %10 = sbr.rel target = $region15
        $region20: #{reverse.0} parent=12 // loop_exit
          _
      $region13: #{reverse.0} parent=4 // pred_fallthru
        _
    $region5: #{reverse.0} parent=1 // pred_fallthru
      _
    %62 = vnop
    %s63 = scalar_lea.vmem [#allocation0], 7
    %v64 = vld [vmem:[%s63] ss:$-1 sm:$0xff]
    %v65 = vrot.slane %v64, 1
    %66 = vst [vmem:[#allocation1] sm:$0xff] %v65
    %s67 = scalar_lea.vmem [#allocation0], 8
    %s68 = scalar_lea.vmem %s67, 7 [#allocation0]
    %v69 = vld [vmem:[%s68] ss:$-1 sm:$0xff]
    %v70 = vrot.slane %v69, 1
    %v71 = vlaneseq
    %v72 = vshrl.u32 %v71, 7
    %vm73 = vcmp.lt.s32.totalorder %v72, 7
    %74 = vst.msk [vmem:[#allocation1] sm:$0xff] %vm73, %v70
    %s75 = scalar_lea.vmem [#allocation1], 8
    %s76 = scalar_lea.vmem [#allocation0], 16
    %s77 = scalar_lea.vmem %s76, 7 [#allocation0]
    %v78 = vld [vmem:[%s77] ss:$-1 sm:$0xff]
    %v79 = vrot.slane %v78, 1
    %80 = vst [vmem:[%s75] sm:$0xff] %v79
    %s81 = scalar_lea.vmem %s76, 8 [#allocation0]
    %s82 = scalar_lea.vmem %s81, 7 [#allocation0]
    %v83 = vld [vmem:[%s82] ss:$-1 sm:$0xff]
    %v84 = vrot.slane %v83, 1
    %v85 = vlaneseq
    %v86 = vshrl.u32 %v85, 7
    %vm87 = vcmp.lt.s32.totalorder %v86, 7
    %88 = vst.msk [vmem:[%s75] sm:$0xff] %vm87, %v84
    %s89 = scalar_lea.vmem [#allocation1], 16
    %s90 = scalar_lea.vmem [#allocation0], 32
    %s91 = scalar_lea.vmem %s90, 7 [#allocation0]
    %v92 = vld [vmem:[%s91] ss:$-1 sm:$0xff]
    %v93 = vrot.slane %v92, 1
    %94 = vst [vmem:[%s89] sm:$0xff] %v93
    %s95 = scalar_lea.vmem %s90, 8 [#allocation0]
    %s96 = scalar_lea.vmem %s95, 7 [#allocation0]
    %v97 = vld [vmem:[%s96] ss:$-1 sm:$0xff]
    %v98 = vrot.slane %v97, 1
    %v99 = vlaneseq
    %v100 = vshrl.u32 %v99, 7
    %vm101 = vcmp.lt.s32.totalorder %v100, 7
    %102 = vst.msk [vmem:[%s89] sm:$0xff] %vm101, %v98
    %s103 = scalar_lea.vmem [#allocation1], 24
    %s104 = scalar_lea.vmem [#allocation0], 48
    %s105 = scalar_lea.vmem %s104, 7 [#allocation0]
    %v106 = vld [vmem:[%s105] ss:$-1 sm:$0xff]
    %v107 = vrot.slane %v106, 1
    %108 = vst [vmem:[%s103] sm:$0xff] %v107
    %s109 = scalar_lea.vmem %s104, 8 [#allocation0]
    %s110 = scalar_lea.vmem %s109, 7 [#allocation0]
    %v111 = vld [vmem:[%s110] ss:$-1 sm:$0xff]
    %v112 = vrot.slane %v111, 1
    %v113 = vlaneseq
    %v114 = vshrl.u32 %v113, 7
    %vm115 = vcmp.lt.s32.totalorder %v114, 7
    %116 = vst.msk [vmem:[%s103] sm:$0xff] %vm115, %v112
    %s117 = scalar_lea.vmem [#allocation1], 32
    %s118 = scalar_lea.vmem [#allocation0], 64
    %s119 = scalar_lea.vmem %s118, 7 [#allocation0]
    %v120 = vld [vmem:[%s119] ss:$-1 sm:$0xff]
    %v121 = vrot.slane %v120, 1
    %122 = vst [vmem:[%s117] sm:$0xff] %v121
    %s123 = scalar_lea.vmem %s118, 8 [#allocation0]
    %s124 = scalar_lea.vmem %s123, 7 [#allocation0]
    %v125 = vld [vmem:[%s124] ss:$-1 sm:$0xff]
    %v126 = vrot.slane %v125, 1
    %v127 = vlaneseq
    %v128 = vshrl.u32 %v127, 7
    %vm129 = vcmp.lt.s32.totalorder %v128, 7
    %130 = vst.msk [vmem:[%s117] sm:$0xff] %vm129, %v126
    %s131 = scalar_lea.vmem [#allocation1], 40
    %s132 = scalar_lea.vmem [#allocation0], 80
    %s133 = scalar_lea.vmem %s132, 7 [#allocation0]
    %v134 = vld [vmem:[%s133] ss:$-1 sm:$0xff]
    %v135 = vrot.slane %v134, 1
    %136 = vst [vmem:[%s131] sm:$0xff] %v135
    %s137 = scalar_lea.vmem %s132, 8 [#allocation0]
    %s138 = scalar_lea.vmem %s137, 7 [#allocation0]
    %v139 = vld [vmem:[%s138] ss:$-1 sm:$0xff]
    %v140 = vrot.slane %v139, 1
    %v141 = vlaneseq
    %v142 = vshrl.u32 %v141, 7
    %vm143 = vcmp.lt.s32.totalorder %v142, 7
    %144 = vst.msk [vmem:[%s131] sm:$0xff] %vm143, %v140
    %s145 = scalar_lea.vmem [#allocation1], 48
    %s146 = scalar_lea.vmem [#allocation0], 96
    %s147 = scalar_lea.vmem %s146, 7 [#allocation0]
    %v148 = vld [vmem:[%s147] ss:$-1 sm:$0xff]
    %v149 = vrot.slane %v148, 1
    %150 = vst [vmem:[%s145] sm:$0xff] %v149
    %s151 = scalar_lea.vmem %s146, 8 [#allocation0]
    %s152 = scalar_lea.vmem %s151, 7 [#allocation0]
    %v153 = vld [vmem:[%s152] ss:$-1 sm:$0xff]
    %v154 = vrot.slane %v153, 1
    %v155 = vlaneseq
    %v156 = vshrl.u32 %v155, 7
    %vm157 = vcmp.lt.s32.totalorder %v156, 7
    %158 = vst.msk [vmem:[%s145] sm:$0xff] %vm157, %v154
    %s159 = scalar_lea.vmem [#allocation1], 56
    %s160 = scalar_lea.vmem [#allocation0], 112
    %s161 = scalar_lea.vmem %s160, 7 [#allocation0]
    %v162 = vld [vmem:[%s161] ss:$-1 sm:$0xff]
    %v163 = vrot.slane %v162, 1
    %164 = vst [vmem:[%s159] sm:$0xff] %v163
    %s165 = scalar_lea.vmem %s160, 8 [#allocation0]
    %s166 = scalar_lea.vmem %s165, 7 [#allocation0]
    %v167 = vld [vmem:[%s166] ss:$-1 sm:$0xff]
    %v168 = vrot.slane %v167, 1
    %v169 = vlaneseq
    %v170 = vshrl.u32 %v169, 7
    %vm171 = vcmp.lt.s32.totalorder %v170, 7
    %172 = vst.msk [vmem:[%s159] sm:$0xff] %vm171, %v168
    // Predicated region
    $region36: #{reverse.0} parent=1 // pred_check
      _
    $region37: #{reverse.0} parent=1 // pred_check_branch
      %174 = sbr.rel (0) target = $region39
    $region38: #{reverse.0} parent=1 // pred_region
      // Predicated region
      $region40: #{reverse.0} parent=38 // pred_check
        _
      $region41: #{reverse.0} parent=38 // pred_check_branch
        %176 = sbr.rel (0) target = $region43
      $region42: #{reverse.0} parent=38 // pred_region
        // Predicated region
        $region55: #{reverse.0} parent=42 // pred_check
          _
        $region56: #{reverse.0} parent=42 // pred_check_branch
          %205 = sbr.rel (0) target = $region58
        $region57: #{reverse.0} parent=42 // pred_region
          loop: start=0, step=1, limit=1
          $region59: #{reverse.0} parent=57 // loop_pre_header
            _
          $region60: #{reverse.0} parent=57 // loop_header
            %s207 = sphi 0, %s211
            %p208 = scmp.ge.s32.totalorder %s207, 1
            %s212 = sphi [#allocation1], [#allocation1]
            %s213 = sphi %s1, %s1
          $region61: #{reverse.0} parent=57 // loop_header_branch
            %210 = sbr.rel (%p208) target = $region65
          $region62: #{reverse.0} parent=57 // loop_body
            %v214 = vld [vmem:[%s212] sm:$0xff]
            %215 = vst [vmem:[%s213] sm:$0xff] %v214
            %v216 = vld [vmem:[%s212 + $0x8] sm:$0xff]
            %217 = vst [vmem:[%s213 + $0x8] sm:$0xff] %v216
            %v218 = vld [vmem:[%s212 + $0x10] sm:$0xff]
            %219 = vst [vmem:[%s213 + $0x10] sm:$0xff] %v218
            %v220 = vld [vmem:[%s212 + $0x18] sm:$0xff]
            %221 = vst [vmem:[%s213 + $0x18] sm:$0xff] %v220
            %v222 = vld [vmem:[%s212 + $0x20] sm:$0xff]
            %223 = vst [vmem:[%s213 + $0x20] sm:$0xff] %v222
            %v224 = vld [vmem:[%s212 + $0x28] sm:$0xff]
            %225 = vst [vmem:[%s213 + $0x28] sm:$0xff] %v224
            %v226 = vld [vmem:[%s212 + $0x30] sm:$0xff]
            %227 = vst [vmem:[%s213 + $0x30] sm:$0xff] %v226
            %v228 = vld [vmem:[%s212 + $0x38] sm:$0xff]
            %229 = vst [vmem:[%s213 + $0x38] sm:$0xff] %v228
          $region63: #{reverse.0} parent=57 // loop_footer
            %s211 = sadd.s32 1, %s207
          $region64: #{reverse.0} parent=57 // loop_footer_branch
            %206 = sbr.rel target = $region60
          $region65: #{reverse.0} parent=57 // loop_exit
            _
        $region58: #{reverse.0} parent=42 // pred_fallthru
          _
        // Predicated region
        $region66: #{reverse.0} parent=42 // pred_check
          _
        $region67: #{reverse.0} parent=42 // pred_check_branch
          %231 = sbr.rel target = $region69
        $region68: #{reverse.0} parent=42 // pred_region
          _
        $region69: #{reverse.0} parent=42 // pred_fallthru
          _
      $region43: #{reverse.0} parent=38 // pred_fallthru
        _
      // Predicated region
      $region44: #{reverse.0} parent=38 // pred_check
        _
      $region45: #{reverse.0} parent=38 // pred_check_branch
        %178 = sbr.rel target = $region47
      $region46: #{reverse.0} parent=38 // pred_region
        loop: start=0, step=1, limit=1
        $region48: #{reverse.0} parent=46 // loop_pre_header
          _
        $region49: #{reverse.0} parent=46 // loop_header
          %s181 = sphi 0, %s185
          %p182 = scmp.ge.s32.totalorder %s181, 1
          %s186 = sphi [#allocation1], [#allocation1]
          %s187 = sphi %s1, %s1
        $region50: #{reverse.0} parent=46 // loop_header_branch
          %184 = sbr.rel (%p182) target = $region54
        $region51: #{reverse.0} parent=46 // loop_body
          %v188 = vld [vmem:[%s186] sm:$0xff]
          %189 = vst [vmem:[%s187] sm:$0xff] %v188
          %v190 = vld [vmem:[%s186 + $0x8] sm:$0xff]
          %191 = vst [vmem:[%s187 + $0x8] sm:$0xff] %v190
          %v192 = vld [vmem:[%s186 + $0x10] sm:$0xff]
          %193 = vst [vmem:[%s187 + $0x10] sm:$0xff] %v192
          %v194 = vld [vmem:[%s186 + $0x18] sm:$0xff]
          %195 = vst [vmem:[%s187 + $0x18] sm:$0xff] %v194
          %v196 = vld [vmem:[%s186 + $0x20] sm:$0xff]
          %197 = vst [vmem:[%s187 + $0x20] sm:$0xff] %v196
          %v198 = vld [vmem:[%s186 + $0x28] sm:$0xff]
          %199 = vst [vmem:[%s187 + $0x28] sm:$0xff] %v198
          %v200 = vld [vmem:[%s186 + $0x30] sm:$0xff]
          %201 = vst [vmem:[%s187 + $0x30] sm:$0xff] %v200
          %v202 = vld [vmem:[%s186 + $0x38] sm:$0xff]
          %203 = vst [vmem:[%s187 + $0x38] sm:$0xff] %v202
        $region52: #{reverse.0} parent=46 // loop_footer
          %s185 = sadd.s32 1, %s181
        $region53: #{reverse.0} parent=46 // loop_footer_branch
          %180 = sbr.rel target = $region49
        $region54: #{reverse.0} parent=46 // loop_exit
          _
      $region47: #{reverse.0} parent=38 // pred_fallthru
        _
    $region39: #{reverse.0} parent=1 // pred_fallthru
      _
    %232 = vnop

// kernel: fourier_unit_forward.3
$region0: #{fourier_unit_forward.3}
  #allocation0 [shape = 'u32[]', space=smem, size = 0x4, offset = 0x4, fixed_abs, tag = 'smem constant byte address 0x4 - core index']
  #allocation1 [shape = 'u32[144,128]{1,0:T(1,128)}', space=vmem, size = 0x12000, scoped, tag = 'internal scratch']
  %s0 = inlined_call_operand.vmem [shape: f32[288,128], index: 0, kind: input, shape index: {}]
  %s1 = inlined_call_operand.vmem [shape: bf16[128,128], index: 1, kind: input, shape index: {}]
  %s2 = inlined_call_operand.vmem [shape: f32[1,128], index: 2, kind: input, shape index: {}]
  %s3 = inlined_call_operand.vmem [shape: f32[1,128], index: 3, kind: input, shape index: {}]
  %s4 = inlined_call_operand.vmem [shape: bf16[288,128], index: 4, kind: output, shape index: {}]
  %s5 = sld [smem:[#allocation0]]
  $region93: #{fourier_unit_forward.3} parent=0
    _
  %s7 = ssub.s32 1, %s5
  %s8 = scalar_select 0, %s7, %s5
  $region1: #{fourier_unit_forward.3} parent=0
    #allocation2 [shape = 'u8[65536]{0}', space=vmem, size = 0x10000, scoped, tag = 'output window, operand 0']
    loop: start=0, step=1, limit=5
    $region2: #{fourier_unit_forward.3} parent=1 // loop_pre_header
      _
    $region3: #{fourier_unit_forward.3} parent=1 // loop_header
      %s10 = sphi 0, %s14
      %p11 = scmp.ge.s32.totalorder %s10, 5
      %s20 = sphi 0, %s22
      %s23 = sphi 0, %s20
      %s24 = sphi 0, %s23
      %s40 = sphi 0, %s24
      %s44 = sphi 0, %s44
      %s46 = sphi 0, %s44
      %s47 = sphi 0, %s46
      %s61 = sphi 0, %s47
      %s65 = sphi 0, %s65
      %s67 = sphi 0, %s65
      %s68 = sphi 0, %s67
      %s82 = sphi 0, %s68
      %s86 = sphi 0, %s86
      %s88 = sphi 0, %s86
      %s89 = sphi 0, %s88
      %s103 = sphi 0, %s89
      %s109 = sphi 0, %s111
      %s112 = sphi 0, %s109
      %s113 = sphi 0, %s112
      %s129 = sphi 0, %s113
    $region4: #{fourier_unit_forward.3} parent=1 // loop_header_branch
      %13 = sbr.rel (%p11) target = $region8
    $region5: #{fourier_unit_forward.3} parent=1 // loop_body
      %s15 = ssub.s32 %s10, 1
      %s16 = ssub.s32 %s10, 2
      %s17 = sadd.s32 %s10, 1
      %s18 = ssub.s32 %s10, %s17
      %p19 = scmp.eq.s32.totalorder %s18, 0
      %s21 = sadd.s32 %s20, 1
      %s22 = scalar_select %p19, %s20, %s21
      %p25 = pneg %p19
      %p26 = scmp.eq.s32.totalorder %s10, 2
      %p27 = por %p25, %p26
      %p28 = scmp.ne.s32.totalorder %s20, %s23
      %p29 = scmp.eq.s32.totalorder %s10, 0
      %p30 = por %p28, %p29
      %p31 = scmp.ne.s32.totalorder %s20, %s23
      %p32 = scmp.eq.s32.totalorder %s15, 2
      %p33 = por %p31, %p32
      %p34 = scmp.ne.s32.totalorder %s23, %s24
      %p35 = scmp.eq.s32.totalorder %s15, 0
      %p36 = por %p34, %p35
      %p37 = scmp.ne.s32.totalorder %s23, %s24
      %p38 = scmp.eq.s32.totalorder %s16, 2
      %p39 = por %p37, %p38
      %p41 = scmp.ne.s32.totalorder %s24, %s40
      %p42 = scmp.eq.s32.totalorder %s16, 0
      %p43 = por %p41, %p42
      %s45 = sadd.s32 %s44, 1
      %p48 = scmp.eq.s32.totalorder %s10, 2
      %p49 = scmp.ne.s32.totalorder %s44, %s46
      %p50 = scmp.eq.s32.totalorder %s10, 0
      %p51 = por %p49, %p50
      %p52 = scmp.ne.s32.totalorder %s44, %s46
      %p53 = scmp.eq.s32.totalorder %s15, 2
      %p54 = por %p52, %p53
      %p55 = scmp.ne.s32.totalorder %s46, %s47
      %p56 = scmp.eq.s32.totalorder %s15, 0
      %p57 = por %p55, %p56
      %p58 = scmp.ne.s32.totalorder %s46, %s47
      %p59 = scmp.eq.s32.totalorder %s16, 2
      %p60 = por %p58, %p59
      %p62 = scmp.ne.s32.totalorder %s47, %s61
      %p63 = scmp.eq.s32.totalorder %s16, 0
      %p64 = por %p62, %p63
      %s66 = sadd.s32 %s65, 1
      %p69 = scmp.eq.s32.totalorder %s10, 2
      %p70 = scmp.ne.s32.totalorder %s65, %s67
      %p71 = scmp.eq.s32.totalorder %s10, 0
      %p72 = por %p70, %p71
      %p73 = scmp.ne.s32.totalorder %s65, %s67
      %p74 = scmp.eq.s32.totalorder %s15, 2
      %p75 = por %p73, %p74
      %p76 = scmp.ne.s32.totalorder %s67, %s68
      %p77 = scmp.eq.s32.totalorder %s15, 0
      %p78 = por %p76, %p77
      %p79 = scmp.ne.s32.totalorder %s67, %s68
      %p80 = scmp.eq.s32.totalorder %s16, 2
      %p81 = por %p79, %p80
      %p83 = scmp.ne.s32.totalorder %s68, %s82
      %p84 = scmp.eq.s32.totalorder %s16, 0
      %p85 = por %p83, %p84
      %s87 = sadd.s32 %s86, 1
      %p90 = scmp.eq.s32.totalorder %s10, 2
      %p91 = scmp.ne.s32.totalorder %s86, %s88
      %p92 = scmp.eq.s32.totalorder %s10, 0
      %p93 = por %p91, %p92
      %p94 = scmp.ne.s32.totalorder %s86, %s88
      %p95 = scmp.eq.s32.totalorder %s15, 2
      %p96 = por %p94, %p95
      %p97 = scmp.ne.s32.totalorder %s88, %s89
      %p98 = scmp.eq.s32.totalorder %s15, 0
      %p99 = por %p97, %p98
      %p100 = scmp.ne.s32.totalorder %s88, %s89
      %p101 = scmp.eq.s32.totalorder %s16, 2
      %p102 = por %p100, %p101
      %p104 = scmp.ne.s32.totalorder %s89, %s103
      %p105 = scmp.eq.s32.totalorder %s16, 0
      %p106 = por %p104, %p105
      %s107 = ssub.s32 %s10, %s17
      %p108 = scmp.eq.s32.totalorder %s107, 0
      %s110 = sadd.s32 %s109, 1
      %s111 = scalar_select %p108, %s109, %s110
      %p114 = pneg %p108
      %p115 = scmp.eq.s32.totalorder %s10, 2
      %p116 = por %p114, %p115
      %p117 = scmp.ne.s32.totalorder %s109, %s112
      %p118 = scmp.eq.s32.totalorder %s10, 0
      %p119 = por %p117, %p118
      %p120 = scmp.ne.s32.totalorder %s109, %s112
      %p121 = scmp.eq.s32.totalorder %s15, 2
      %p122 = por %p120, %p121
      %p123 = scmp.ne.s32.totalorder %s112, %s113
      %p124 = scmp.eq.s32.totalorder %s15, 0
      %p125 = por %p123, %p124
      %p126 = scmp.ne.s32.totalorder %s112, %s113
      %p127 = scmp.eq.s32.totalorder %s16, 2
      %p128 = por %p126, %p127
      %p130 = scmp.ne.s32.totalorder %s113, %s129
      %p131 = scmp.eq.s32.totalorder %s16, 0
      %p132 = por %p130, %p131
      %p133 = scmp.le.s32.totalorder 1, %s10
      %p134 = scmp.lt.s32.totalorder %s10, 4
      %p135 = pnand %p133, %p134
      %p136 = pneg %p135
      // Predicated region
      $region9: #{fourier_unit_forward.3} parent=5 // pred_check
        _
      $region10: #{fourier_unit_forward.3} parent=5 // pred_check_branch
        %138 = sbr.rel (%p135) target = $region12
      $region11: #{fourier_unit_forward.3} parent=5 // pred_region
        %s139 = ssub.s32 %s10, 1
        // Predicated region
        $region13: #{fourier_unit_forward.3} parent=11 // pred_check
          %p140 = pneg %p57
        $region14: #{fourier_unit_forward.3} parent=11 // pred_check_branch
          %142 = sbr.rel (%p140) target = $region16
        $region15: #{fourier_unit_forward.3} parent=11 // pred_region
          _
        $region16: #{fourier_unit_forward.3} parent=11 // pred_fallthru
          _
        // Predicated region
        $region17: #{fourier_unit_forward.3} parent=11 // pred_check
          %p143 = pneg %p78
        $region18: #{fourier_unit_forward.3} parent=11 // pred_check_branch
          %145 = sbr.rel (%p143) target = $region20
        $region19: #{fourier_unit_forward.3} parent=11 // pred_region
          _
        $region20: #{fourier_unit_forward.3} parent=11 // pred_fallthru
          _
        // Predicated region
        $region21: #{fourier_unit_forward.3} parent=11 // pred_check
          %p146 = pneg %p99
        $region22: #{fourier_unit_forward.3} parent=11 // pred_check_branch
          %148 = sbr.rel (%p146) target = $region24
        $region23: #{fourier_unit_forward.3} parent=11 // pred_region
          _
        $region24: #{fourier_unit_forward.3} parent=11 // pred_fallthru
          _
      $region12: #{fourier_unit_forward.3} parent=5 // pred_fallthru
        _
      %p149 = scmp.lt.s32.totalorder %s10, 3
      // Predicated region
      $region25: #{fourier_unit_forward.3} parent=5 // pred_check
        %p150 = pneg %p149
      $region26: #{fourier_unit_forward.3} parent=5 // pred_check_branch
        %152 = sbr.rel (%p150) target = $region28
      $region27: #{fourier_unit_forward.3} parent=5 // pred_region
        // Predicated region
        $region29: #{fourier_unit_forward.3} parent=27 // pred_check
          %p153 = pneg %p30
        $region30: #{fourier_unit_forward.3} parent=27 // pred_check_branch
          %155 = sbr.rel (%p153) target = $region32
        $region31: #{fourier_unit_forward.3} parent=27 // pred_region
          %s156 = smul.u32 16, %s10
          %s157 = ssub.s32 36, %s156
          %p158 = scmp.lt.s32.totalorder %s157, 16
          %s159 = scalar_select %p158, %s157, 16
          %s160 = smul.u32 128, %s159
          %p161 = scmp.lt.s32.totalorder %s156, 35
          %s162 = scalar_select %p161, %s156, 35
          %s163 = smul.addr %s162, 8
          %s164 = scalar_lea.vmem %s0, %s163
          %s165 = smul.u32 16, %s10
          %s166 = ssub.s32 36, %s165
          %p167 = scmp.lt.s32.totalorder %s166, 16
          %s168 = scalar_select %p167, %s166, 16
          %s169 = smul.u32 128, %s168
        $region32: #{fourier_unit_forward.3} parent=27 // pred_fallthru
          _
      $region28: #{fourier_unit_forward.3} parent=5 // pred_fallthru
        _
      %p170 = scmp.le.s32.totalorder 1, %s10
      %p171 = scmp.lt.s32.totalorder %s10, 4
      %p172 = pnand %p170, %p171
      %p173 = pneg %p172
      // Predicated region
      $region33: #{fourier_unit_forward.3} parent=5 // pred_check
        _
      $region34: #{fourier_unit_forward.3} parent=5 // pred_check_branch
        %175 = sbr.rel (%p172) target = $region36
      $region35: #{fourier_unit_forward.3} parent=5 // pred_region
        %s176 = ssub.s32 %s10, 1
        %s177 = smul.u32 16, %s15
        %s178 = ssub.s32 36, %s177
        %p179 = scmp.lt.s32.totalorder %s178, 16
        %s180 = scalar_select %p179, %s178, 16
        %s181 = smul.u32 128, %s180
        %p182 = scmp.lt.s32.totalorder %s177, 35
        %s183 = scalar_select %p182, %s177, 35
        %s184 = smul.addr %s183, 8
        %s185 = scalar_lea.vmem %s0, %s184
        %p186 = pneg %p36
        %p187 = pneg %p33
        %p188 = pneg %p57
        %p189 = pneg %p54
        %p190 = pneg %p78
        %p191 = pneg %p75
        %p192 = pneg %p99
        %p193 = pneg %p96
        %p194 = pneg %p125
        %p195 = pneg %p122
        %s196 = sand.u32 %s112, 1
        %s197 = sand.u32 %s112, 1
        %s198 = smul.addr %s197, 64
        %s199 = scalar_lea.vmem [#allocation2], %s198
        %s200 = smul.u32 16, %s15
        %s201 = ssub.s32 36, %s200
        %p202 = scmp.lt.s32.totalorder %s201, 16
        %s203 = scalar_select %p202, %s201, 16
        %s204 = smul.u32 128, %s203
        %p205 = scmp.lt.s32.totalorder %s200, 35
        %s206 = scalar_select %p205, %s200, 35
        %s207 = smul.addr %s206, 8
        %s208 = scalar_lea.vmem %s0, %s207
        %s209 = smul.u32 16, %s15
        %s210 = ssub.s32 36, %s209
        %p211 = scmp.lt.s32.totalorder %s210, 16
        %s212 = scalar_select %p211, %s210, 16
        %s213 = smul.u32 128, %s212
        %s214 = smul.u32 16, %s15
        %s215 = ssub.s32 36, %s214
        %p216 = scmp.lt.s32.totalorder %s215, 16
        %s217 = scalar_select %p216, %s215, 16
        %s218 = smul.u32 64, %s217
        %v220 = vld [vmem:[%s208] sm:$0xff]
        %v221 = vld [vmem:[%s208 + $0x8] sm:$0xff]
        %v222 = vld [vmem:[%s208 + $0x10] sm:$0xff]
        %v223 = vld [vmem:[%s208 + $0x18] sm:$0xff]
        %v224 = vld [vmem:[%s208 + $0x20] sm:$0xff]
        %v225 = vld [vmem:[%s208 + $0x28] sm:$0xff]
        %v226 = vld [vmem:[%s208 + $0x30] sm:$0xff]
        %v227 = vld [vmem:[%s208 + $0x38] sm:$0xff]
        %v228 = vld [vmem:[%s208 + $0x40] sm:$0xff]
        %v229 = vld [vmem:[%s208 + $0x48] sm:$0xff]
        %v230 = vld [vmem:[%s208 + $0x50] sm:$0xff]
        %v231 = vld [vmem:[%s208 + $0x58] sm:$0xff]
        %v232 = vld [vmem:[%s208 + $0x60] sm:$0xff]
        %v233 = vld [vmem:[%s208 + $0x68] sm:$0xff]
        %v234 = vld [vmem:[%s208 + $0x70] sm:$0xff]
        %v235 = vld [vmem:[%s208 + $0x78] sm:$0xff]
        %v236 = vpack.c.bf16 %v221, %v220
        %v237 = vpack.c.bf16 %v223, %v222
        %v238 = vpack.c.bf16 %v225, %v224
        %v239 = vpack.c.bf16 %v227, %v226
        %v240 = vpack.c.bf16 %v229, %v228
        %v241 = vpack.c.bf16 %v231, %v230
        %v242 = vpack.c.bf16 %v233, %v232
        %v243 = vpack.c.bf16 %v235, %v234
        %v244 = vld [vmem:[%s1] sm:$0xf]
        %v245 = vld [vmem:[%s1 + $0x4] sm:$0xf]
        %v246 = vld [vmem:[%s1 + $0x8] sm:$0xf]
        %v247 = vld [vmem:[%s1 + $0xc] sm:$0xf]
        %v248 = vld [vmem:[%s1 + $0x10] sm:$0xf]
        %v249 = vld [vmem:[%s1 + $0x14] sm:$0xf]
        %v250 = vld [vmem:[%s1 + $0x18] sm:$0xf]
        %v251 = vld [vmem:[%s1 + $0x1c] sm:$0xf]
        %v252 = vld [vmem:[%s1 + $0x20] sm:$0xf]
        %v253 = vld [vmem:[%s1 + $0x24] sm:$0xf]
        %v254 = vld [vmem:[%s1 + $0x28] sm:$0xf]
        %v255 = vld [vmem:[%s1 + $0x2c] sm:$0xf]
        %v256 = vld [vmem:[%s1 + $0x30] sm:$0xf]
        %v257 = vld [vmem:[%s1 + $0x34] sm:$0xf]
        %v258 = vld [vmem:[%s1 + $0x38] sm:$0xf]
        %v259 = vld [vmem:[%s1 + $0x3c] sm:$0xf]
        %v276 = vunpack.c.l.b16 %v244
        %v277 = vunpack.c.l.b16 %v245
        %v278 = vunpack.c.l.b16 %v246
        %v279 = vunpack.c.l.b16 %v247
        %v280 = vunpack.c.l.b16 %v248
        %v281 = vunpack.c.l.b16 %v249
        %v282 = vunpack.c.l.b16 %v250
        %v283 = vunpack.c.l.b16 %v251
        %v284 = vunpack.c.l.b16 %v252
        %v285 = vunpack.c.l.b16 %v253
        %v286 = vunpack.c.l.b16 %v254
        %v287 = vunpack.c.l.b16 %v255
        %v288 = vunpack.c.l.b16 %v256
        %v289 = vunpack.c.l.b16 %v257
        %v290 = vunpack.c.l.b16 %v258
        %v291 = vunpack.c.l.b16 %v259
        %v292 = vpack.c.b16 %v277, %v276
        %v293 = vpack.c.b16 %v279, %v278
        %v294 = vpack.c.b16 %v281, %v280
        %v295 = vpack.c.b16 %v283, %v282
        %v296 = vpack.c.b16 %v285, %v284
        %v297 = vpack.c.b16 %v287, %v286
        %v298 = vpack.c.b16 %v289, %v288
        %v299 = vpack.c.b16 %v291, %v290
        %308 = vmatprep.subr.bf16.mxu0 0
        %309 = vmatpush1.bf16.msra.mxu0 %v292
        %310 = vmatprep.subr.bf16.mxu0 0
        %311 = vmatpush1.bf16.msra.mxu0 %v293
        %312 = vmatprep.subr.bf16.mxu0 0
        %313 = vmatpush1.bf16.msra.mxu0 %v294
        %314 = vmatprep.subr.bf16.mxu0 0
        %315 = vmatpush1.bf16.msra.mxu0 %v295
        %316 = vmatprep.subr.bf16.mxu0 0
        %317 = vmatpush1.bf16.msra.mxu0 %v296
        %318 = vmatprep.subr.bf16.mxu0 0
        %319 = vmatpush1.bf16.msra.mxu0 %v297
        %320 = vmatprep.subr.bf16.mxu0 0
        %321 = vmatpush1.bf16.msra.mxu0 %v298
        %322 = vmatprep.subr.bf16.mxu0 0
        %323 = vmatpush1.bf16.msra.mxu0 %v299
        %324 = vmatprep.subr.bf16.mxu0 0
        %325 = vmatpush1.bf16.msra.mxu0 0
        %326 = vmatprep.subr.bf16.mxu0 0
        %327 = vmatpush1.bf16.msra.mxu0 0
        %328 = vmatprep.subr.bf16.mxu0 0
        %329 = vmatpush1.bf16.msra.mxu0 0
        %330 = vmatprep.subr.bf16.mxu0 0
        %331 = vmatpush1.bf16.msra.mxu0 0
        %332 = vmatprep.subr.bf16.mxu0 0
        %333 = vmatpush1.bf16.msra.mxu0 0
        %334 = vmatprep.subr.bf16.mxu0 0
        %335 = vmatpush1.bf16.msra.mxu0 0
        %336 = vmatprep.subr.bf16.mxu0 0
        %337 = vmatpush1.bf16.msra.mxu0 0
        %338 = vmatprep.subr.bf16.mxu0 0
        %339 = vmatpush1.bf16.msra.mxu0 0
        %340 = vmatprep.mubr.bf16.mxu0 0
        %341 = vmatmul.mubr.bf16.gmra.mrb[0].mxu0 %v236
        %v342 = vpop.f32.mrb[0].mxu0
        %v343 = vadd.f32 0.0, %v342
        %v344 = vpop.f32.mrb[0].mxu0
        %v345 = vpop.f32.mrb[0].mxu0
        %v346 = vadd.f32 0.0, %v345
        %v347 = vpop.f32.mrb[0].mxu0
        %348 = vmatprep.mubr.bf16.mxu0 0
        %349 = vmatmul.mubr.bf16.gmra.mrb[0].mxu0 %v237
        %v350 = vpop.f32.mrb[0].mxu0
        %v351 = vadd.f32 0.0, %v350
        %v352 = vpop.f32.mrb[0].mxu0
        %v353 = vpop.f32.mrb[0].mxu0
        %v354 = vadd.f32 0.0, %v353
        %v355 = vpop.f32.mrb[0].mxu0
        %356 = vmatprep.mubr.bf16.mxu0 0
        %357 = vmatmul.mubr.bf16.gmra.mrb[0].mxu0 %v238
        %v358 = vpop.f32.mrb[0].mxu0
        %v359 = vadd.f32 0.0, %v358
        %v360 = vpop.f32.mrb[0].mxu0
        %v361 = vpop.f32.mrb[0].mxu0
        %v362 = vadd.f32 0.0, %v361
        %v363 = vpop.f32.mrb[0].mxu0
        %364 = vmatprep.mubr.bf16.mxu0 0
        %365 = vmatmul.mubr.bf16.gmra.mrb[0].mxu0 %v239
        %v366 = vpop.f32.mrb[0].mxu0
        %v367 = vadd.f32 0.0, %v366
        %v368 = vpop.f32.mrb[0].mxu0
        %v369 = vpop.f32.mrb[0].mxu0
        %v370 = vadd.f32 0.0, %v369
        %v371 = vpop.f32.mrb[0].mxu0
        %372 = vmatprep.mubr.bf16.mxu0 0
        %373 = vmatmul.mubr.bf16.gmra.mrb[0].mxu0 %v240
        %v374 = vpop.f32.mrb[0].mxu0
        %v375 = vadd.f32 0.0, %v374
        %v376 = vpop.f32.mrb[0].mxu0
        %v377 = vpop.f32.mrb[0].mxu0
        %v378 = vadd.f32 0.0, %v377
        %v379 = vpop.f32.mrb[0].mxu0
        %380 = vmatprep.mubr.bf16.mxu0 0
        %381 = vmatmul.mubr.bf16.gmra.mrb[0].mxu0 %v241
        %v382 = vpop.f32.mrb[0].mxu0
        %v383 = vadd.f32 0.0, %v382
        %v384 = vpop.f32.mrb[0].mxu0
        %v385 = vpop.f32.mrb[0].mxu0
        %v386 = vadd.f32 0.0, %v385
        %v387 = vpop.f32.mrb[0].mxu0
        %388 = vmatprep.mubr.bf16.mxu0 0
        %389 = vmatmul.mubr.bf16.gmra.mrb[0].mxu0 %v242
        %v390 = vpop.f32.mrb[0].mxu0
        %v391 = vadd.f32 0.0, %v390
        %v392 = vpop.f32.mrb[0].mxu0
        %v393 = vpop.f32.mrb[0].mxu0
        %v394 = vadd.f32 0.0, %v393
        %v395 = vpop.f32.mrb[0].mxu0
        %396 = vmatprep.mubr.bf16.mxu0 0
        %397 = vmatmul.mubr.bf16.gmra.mrb[0].mxu0 %v243
        %v398 = vpop.f32.mrb[0].mxu0
        %v399 = vadd.f32 0.0, %v398
        %v400 = vpop.f32.mrb[0].mxu0
        %v401 = vpop.f32.mrb[0].mxu0
        %v402 = vadd.f32 0.0, %v401
        %v403 = vpop.f32.mrb[0].mxu0
        %404 = vdwg.mxu0
        %v405 = vld [vmem:[%s2] sm:$0x1]
        %v407 = vlaneseq
        %v408 = vshrl.u32 %v407, 7
        %v409 = vsub.s32 0, %v408
        %v410 = vrot.slane %v405, %v409
        %v412 = vmul.f32 %v343, %v410
        %v413 = vmul.f32 %v346, %v410
        %v414 = vmul.f32 %v351, %v410
        %v415 = vmul.f32 %v354, %v410
        %v416 = vmul.f32 %v359, %v410
        %v417 = vmul.f32 %v362, %v410
        %v418 = vmul.f32 %v367, %v410
        %v419 = vmul.f32 %v370, %v410
        %v420 = vmul.f32 %v375, %v410
        %v421 = vmul.f32 %v378, %v410
        %v422 = vmul.f32 %v383, %v410
        %v423 = vmul.f32 %v386, %v410
        %v424 = vmul.f32 %v391, %v410
        %v425 = vmul.f32 %v394, %v410
        %v426 = vmul.f32 %v399, %v410
        %v427 = vmul.f32 %v402, %v410
        %v428 = vld [vmem:[%s3] sm:$0x1]
        %v430 = vlaneseq
        %v431 = vshrl.u32 %v430, 7
        %v432 = vsub.s32 0, %v431
        %v433 = vrot.slane %v428, %v432
        %v435 = vadd.f32 %v412, %v433
        %v436 = vadd.f32 %v413, %v433
        %v437 = vadd.f32 %v414, %v433
        %v438 = vadd.f32 %v415, %v433
        %v439 = vadd.f32 %v416, %v433
        %v440 = vadd.f32 %v417, %v433
        %v441 = vadd.f32 %v418, %v433
        %v442 = vadd.f32 %v419, %v433
        %v443 = vadd.f32 %v420, %v433
        %v444 = vadd.f32 %v421, %v433
        %v445 = vadd.f32 %v422, %v433
        %v446 = vadd.f32 %v423, %v433
        %v447 = vadd.f32 %v424, %v433
        %v448 = vadd.f32 %v425, %v433
        %v449 = vadd.f32 %v426, %v433
        %v450 = vadd.f32 %v427, %v433
        %v451 = vmax.f32 %v435, 0.0
        %v452 = vmax.f32 %v436, 0.0
        %v453 = vmax.f32 %v437, 0.0
        %v454 = vmax.f32 %v438, 0.0
        %v455 = vmax.f32 %v439, 0.0
        %v456 = vmax.f32 %v440, 0.0
        %v457 = vmax.f32 %v441, 0.0
        %v458 = vmax.f32 %v442, 0.0
        %v459 = vmax.f32 %v443, 0.0
        %v460 = vmax.f32 %v444, 0.0
        %v461 = vmax.f32 %v445, 0.0
        %v462 = vmax.f32 %v446, 0.0
        %v463 = vmax.f32 %v447, 0.0
        %v464 = vmax.f32 %v448, 0.0
        %v465 = vmax.f32 %v449, 0.0
        %v466 = vmax.f32 %v450, 0.0
        %v467 = vpack.c.bf16 %v452, %v451
        %v468 = vpack.c.bf16 %v454, %v453
        %v469 = vpack.c.bf16 %v456, %v455
        %v470 = vpack.c.bf16 %v458, %v457
        %v471 = vpack.c.bf16 %v460, %v459
        %v472 = vpack.c.bf16 %v462, %v461
        %v473 = vpack.c.bf16 %v464, %v463
        %v474 = vpack.c.bf16 %v466, %v465
        %v483 = vunpack.c.l.b16 %v467
        %v484 = vunpack.c.h.b16 %v467
        %v485 = vunpack.c.l.b16 %v468
        %v486 = vunpack.c.h.b16 %v468
        %v487 = vunpack.c.l.b16 %v469
        %v488 = vunpack.c.h.b16 %v469
        %v489 = vunpack.c.l.b16 %v470
        %v490 = vunpack.c.h.b16 %v470
        %v491 = vunpack.c.l.b16 %v471
        %v492 = vunpack.c.h.b16 %v471
        %v493 = vunpack.c.l.b16 %v472
        %v494 = vunpack.c.h.b16 %v472
        %v495 = vunpack.c.l.b16 %v473
        %v496 = vunpack.c.h.b16 %v473
        %v497 = vunpack.c.l.b16 %v474
        %v498 = vunpack.c.h.b16 %v474
        %v499 = vpack.c.b16 %v483, %v483
        %v500 = vpack.c.b16 %v484, %v484
        %v501 = vpack.c.b16 %v485, %v485
        %v502 = vpack.c.b16 %v486, %v486
        %v503 = vpack.c.b16 %v487, %v487
        %v504 = vpack.c.b16 %v488, %v488
        %v505 = vpack.c.b16 %v489, %v489
        %v506 = vpack.c.b16 %v490, %v490
        %v507 = vpack.c.b16 %v491, %v491
        %v508 = vpack.c.b16 %v492, %v492
        %v509 = vpack.c.b16 %v493, %v493
        %v510 = vpack.c.b16 %v494, %v494
        %v511 = vpack.c.b16 %v495, %v495
        %v512 = vpack.c.b16 %v496, %v496
        %v513 = vpack.c.b16 %v497, %v497
        %v514 = vpack.c.b16 %v498, %v498
        %531 = vst [vmem:[%s199] sm:$0xf] %v499
        %532 = vst [vmem:[%s199 + $0x4] sm:$0xf] %v500
        %533 = vst [vmem:[%s199 + $0x8] sm:$0xf] %v501
        %534 = vst [vmem:[%s199 + $0xc] sm:$0xf] %v502
        %535 = vst [vmem:[%s199 + $0x10] sm:$0xf] %v503
        %536 = vst [vmem:[%s199 + $0x14] sm:$0xf] %v504
        %537 = vst [vmem:[%s199 + $0x18] sm:$0xf] %v505
        %538 = vst [vmem:[%s199 + $0x1c] sm:$0xf] %v506
        %539 = vst [vmem:[%s199 + $0x20] sm:$0xf] %v507
        %540 = vst [vmem:[%s199 + $0x24] sm:$0xf] %v508
        %541 = vst [vmem:[%s199 + $0x28] sm:$0xf] %v509
        %542 = vst [vmem:[%s199 + $0x2c] sm:$0xf] %v510
        %543 = vst [vmem:[%s199 + $0x30] sm:$0xf] %v511
        %544 = vst [vmem:[%s199 + $0x34] sm:$0xf] %v512
        %545 = vst [vmem:[%s199 + $0x38] sm:$0xf] %v513
        %546 = vst [vmem:[%s199 + $0x3c] sm:$0xf] %v514
        %s547 = sand.u32 %s112, 1
        %s548 = sand.u32 %s112, 1
        %s549 = smul.addr %s548, 64
        %s550 = scalar_lea.vmem [#allocation2], %s549
        // Predicated region
        $region37: #{fourier_unit_forward.3} parent=35 // pred_check
          %p551 = pneg %p122
        $region38: #{fourier_unit_forward.3} parent=35 // pred_check_branch
          %553 = sbr.rel (%p551) target = $region40
        $region39: #{fourier_unit_forward.3} parent=35 // pred_region
          %s554 = smul.u32 16, %s15
          %s555 = ssub.s32 36, %s554
          %p556 = scmp.lt.s32.totalorder %s555, 16
          %s557 = scalar_select %p556, %s555, 16
          %s558 = smul.u32 64, %s557
          %p559 = scmp.ne.s32.totalorder 0, %s558
          %s560 = smul.addr %s554, 4
          %s561 = scalar_lea.vmem %s4, %s560
          // Predicated region
          $region41: #{fourier_unit_forward.3} parent=39 // pred_check
            %p562 = pneg %p559
          $region42: #{fourier_unit_forward.3} parent=39 // pred_check_branch
            %564 = sbr.rel (%p562) target = $region44
          $region43: #{fourier_unit_forward.3} parent=39 // pred_region
            // Predicated region
            $region45: #{fourier_unit_forward.3} parent=43 // pred_check
              _
            $region46: #{fourier_unit_forward.3} parent=43 // pred_check_branch
              %566 = sbr.rel target = $region48
            $region47: #{fourier_unit_forward.3} parent=43 // pred_region
              // Predicated region
              $region67: #{fourier_unit_forward.3} parent=47 // pred_check
                _
              $region68: #{fourier_unit_forward.3} parent=47 // pred_check_branch
                %645 = sbr.rel (0) target = $region70
              $region69: #{fourier_unit_forward.3} parent=47 // pred_region
                %s647 = sshrl.u32 %s557, 4
                // While loop
                $region71: #{fourier_unit_forward.3} parent=69 // loop_pre_header
                  _
                $region72: #{fourier_unit_forward.3} parent=69 // loop_header
                  %s649 = sphi 0, %s651
                  %p650 = scmp.ge.s32.totalorder %s649, %s647
                  %s654 = sphi 0, %s691
                  %s655 = sphi %s550, %s694
                  %s656 = sphi %s561, %s695
                $region73: #{fourier_unit_forward.3} parent=69 // loop_header_branch
                  %653 = sbr.rel (%p650) target = $region77
                $region74: #{fourier_unit_forward.3} parent=69 // loop_body
                  %v657 = vld [vmem:[%s655] sm:$0xf]
                  %658 = vst [vmem:[%s656] sm:$0xf] %v657
                  %v659 = vld [vmem:[%s655 + $0x4] sm:$0xf]
                  %660 = vst [vmem:[%s656 + $0x4] sm:$0xf] %v659
                  %v661 = vld [vmem:[%s655 + $0x8] sm:$0xf]
                  %662 = vst [vmem:[%s656 + $0x8] sm:$0xf] %v661
                  %v663 = vld [vmem:[%s655 + $0xc] sm:$0xf]
                  %664 = vst [vmem:[%s656 + $0xc] sm:$0xf] %v663
                  %v665 = vld [vmem:[%s655 + $0x10] sm:$0xf]
                  %666 = vst [vmem:[%s656 + $0x10] sm:$0xf] %v665
                  %v667 = vld [vmem:[%s655 + $0x14] sm:$0xf]
                  %668 = vst [vmem:[%s656 + $0x14] sm:$0xf] %v667
                  %v669 = vld [vmem:[%s655 + $0x18] sm:$0xf]
                  %670 = vst [vmem:[%s656 + $0x18] sm:$0xf] %v669
                  %v671 = vld [vmem:[%s655 + $0x1c] sm:$0xf]
                  %672 = vst [vmem:[%s656 + $0x1c] sm:$0xf] %v671
                  %v673 = vld [vmem:[%s655 + $0x20] sm:$0xf]
                  %674 = vst [vmem:[%s656 + $0x20] sm:$0xf] %v673
                  %v675 = vld [vmem:[%s655 + $0x24] sm:$0xf]
                  %676 = vst [vmem:[%s656 + $0x24] sm:$0xf] %v675
                  %v677 = vld [vmem:[%s655 + $0x28] sm:$0xf]
                  %678 = vst [vmem:[%s656 + $0x28] sm:$0xf] %v677
                  %v679 = vld [vmem:[%s655 + $0x2c] sm:$0xf]
                  %680 = vst [vmem:[%s656 + $0x2c] sm:$0xf] %v679
                  %v681 = vld [vmem:[%s655 + $0x30] sm:$0xf]
                  %682 = vst [vmem:[%s656 + $0x30] sm:$0xf] %v681
                  %v683 = vld [vmem:[%s655 + $0x34] sm:$0xf]
                  %684 = vst [vmem:[%s656 + $0x34] sm:$0xf] %v683
                  %v685 = vld [vmem:[%s655 + $0x38] sm:$0xf]
                  %686 = vst [vmem:[%s656 + $0x38] sm:$0xf] %v685
                  %v687 = vld [vmem:[%s655 + $0x3c] sm:$0xf]
                  %688 = vst [vmem:[%s656 + $0x3c] sm:$0xf] %v687
                  %s689 = sadd.s32 1, %s654
                  %p690 = scmp.ge.s32.totalorder %s689, %s647
                  %s691 = scalar_select %p690, 0, %s689
                  %s692 = smul.u32 %s691, 64
                  %s693 = smul.u32 %s691, 64
                  %s694 = scalar_lea.vmem %s550, %s692 [#allocation2]
                  %s695 = scalar_lea.vmem %s561, %s693
                $region75: #{fourier_unit_forward.3} parent=69 // loop_footer
                  %s651 = sadd.s32 %s649, 1
                $region76: #{fourier_unit_forward.3} parent=69 // loop_footer_branch
                  %648 = sbr.rel target = $region72
                $region77: #{fourier_unit_forward.3} parent=69 // loop_exit
                  _
                %s696 = sshrl.u32 %s557, 4
                %s697 = sand.u32 %s557, 15
                %s698 = smul.u32 %s696, 16
                %s699 = smul.u32 4, %s698
                %s700 = scalar_lea.vmem %s550, %s699 [#allocation2]
                %s701 = smul.u32 4, %s698
                %s702 = scalar_lea.vmem %s561, %s701
                // While loop
                $region78: #{fourier_unit_forward.3} parent=69 // loop_pre_header
                  _
                $region79: #{fourier_unit_forward.3} parent=69 // loop_header
                  %s704 = sphi 0, %s706
                  %p705 = scmp.ge.s32.totalorder %s704, %s697
                  %s709 = sphi 0, %s716
                  %s710 = sphi %s700, %s719
                  %s711 = sphi %s702, %s720
                $region80: #{fourier_unit_forward.3} parent=69 // loop_header_branch
                  %708 = sbr.rel (%p705) target = $region84
                $region81: #{fourier_unit_forward.3} parent=69 // loop_body
                  %v712 = vld [vmem:[%s710] sm:$0xf]
                  %713 = vst [vmem:[%s711] sm:$0xf] %v712
                  %s714 = sadd.s32 1, %s709
                  %p715 = scmp.ge.s32.totalorder %s714, %s697
                  %s716 = scalar_select %p715, 0, %s714
                  %s717 = smul.u32 %s716, 4
                  %s718 = smul.u32 %s716, 4
                  %s719 = scalar_lea.vmem %s700, %s717 [#allocation2]
                  %s720 = scalar_lea.vmem %s702, %s718
                $region82: #{fourier_unit_forward.3} parent=69 // loop_footer
                  %s706 = sadd.s32 %s704, 1
                $region83: #{fourier_unit_forward.3} parent=69 // loop_footer_branch
                  %703 = sbr.rel target = $region79
                $region84: #{fourier_unit_forward.3} parent=69 // loop_exit
                  _
              $region70: #{fourier_unit_forward.3} parent=47 // pred_fallthru
                _
            $region48: #{fourier_unit_forward.3} parent=43 // pred_fallthru
              _
            // Predicated region
            $region49: #{fourier_unit_forward.3} parent=43 // pred_check
              _
            $region50: #{fourier_unit_forward.3} parent=43 // pred_check_branch
              %568 = sbr.rel (0) target = $region52
            $region51: #{fourier_unit_forward.3} parent=43 // pred_region
              %s570 = sshrl.u32 %s557, 4
              // While loop
              $region53: #{fourier_unit_forward.3} parent=51 // loop_pre_header
                _
              $region54: #{fourier_unit_forward.3} parent=51 // loop_header
                %s572 = sphi 0, %s574
                %p573 = scmp.ge.s32.totalorder %s572, %s570
                %s577 = sphi 0, %s614
                %s578 = sphi %s550, %s617
                %s579 = sphi %s561, %s618
              $region55: #{fourier_unit_forward.3} parent=51 // loop_header_branch
                %576 = sbr.rel (%p573) target = $region59
              $region56: #{fourier_unit_forward.3} parent=51 // loop_body
                %v580 = vld [vmem:[%s578] sm:$0xf]
                %581 = vst [vmem:[%s579] sm:$0xf] %v580
                %v582 = vld [vmem:[%s578 + $0x4] sm:$0xf]
                %583 = vst [vmem:[%s579 + $0x4] sm:$0xf] %v582
                %v584 = vld [vmem:[%s578 + $0x8] sm:$0xf]
                %585 = vst [vmem:[%s579 + $0x8] sm:$0xf] %v584
                %v586 = vld [vmem:[%s578 + $0xc] sm:$0xf]
                %587 = vst [vmem:[%s579 + $0xc] sm:$0xf] %v586
                %v588 = vld [vmem:[%s578 + $0x10] sm:$0xf]
                %589 = vst [vmem:[%s579 + $0x10] sm:$0xf] %v588
                %v590 = vld [vmem:[%s578 + $0x14] sm:$0xf]
                %591 = vst [vmem:[%s579 + $0x14] sm:$0xf] %v590
                %v592 = vld [vmem:[%s578 + $0x18] sm:$0xf]
                %593 = vst [vmem:[%s579 + $0x18] sm:$0xf] %v592
                %v594 = vld [vmem:[%s578 + $0x1c] sm:$0xf]
                %595 = vst [vmem:[%s579 + $0x1c] sm:$0xf] %v594
                %v596 = vld [vmem:[%s578 + $0x20] sm:$0xf]
                %597 = vst [vmem:[%s579 + $0x20] sm:$0xf] %v596
                %v598 = vld [vmem:[%s578 + $0x24] sm:$0xf]
                %599 = vst [vmem:[%s579 + $0x24] sm:$0xf] %v598
                %v600 = vld [vmem:[%s578 + $0x28] sm:$0xf]
                %601 = vst [vmem:[%s579 + $0x28] sm:$0xf] %v600
                %v602 = vld [vmem:[%s578 + $0x2c] sm:$0xf]
                %603 = vst [vmem:[%s579 + $0x2c] sm:$0xf] %v602
                %v604 = vld [vmem:[%s578 + $0x30] sm:$0xf]
                %605 = vst [vmem:[%s579 + $0x30] sm:$0xf] %v604
                %v606 = vld [vmem:[%s578 + $0x34] sm:$0xf]
                %607 = vst [vmem:[%s579 + $0x34] sm:$0xf] %v606
                %v608 = vld [vmem:[%s578 + $0x38] sm:$0xf]
                %609 = vst [vmem:[%s579 + $0x38] sm:$0xf] %v608
                %v610 = vld [vmem:[%s578 + $0x3c] sm:$0xf]
                %611 = vst [vmem:[%s579 + $0x3c] sm:$0xf] %v610
                %s612 = sadd.s32 1, %s577
                %p613 = scmp.ge.s32.totalorder %s612, %s570
                %s614 = scalar_select %p613, 0, %s612
                %s615 = smul.u32 %s614, 64
                %s616 = smul.u32 %s614, 64
                %s617 = scalar_lea.vmem %s550, %s615 [#allocation2]
                %s618 = scalar_lea.vmem %s561, %s616
              $region57: #{fourier_unit_forward.3} parent=51 // loop_footer
                %s574 = sadd.s32 %s572, 1
              $region58: #{fourier_unit_forward.3} parent=51 // loop_footer_branch
                %571 = sbr.rel target = $region54
              $region59: #{fourier_unit_forward.3} parent=51 // loop_exit
                _
              %s619 = sshrl.u32 %s557, 4
              %s620 = sand.u32 %s557, 15
              %s621 = smul.u32 %s619, 16
              %s622 = smul.u32 4, %s621
              %s623 = scalar_lea.vmem %s550, %s622 [#allocation2]
              %s624 = smul.u32 4, %s621
              %s625 = scalar_lea.vmem %s561, %s624
              // While loop
              $region60: #{fourier_unit_forward.3} parent=51 // loop_pre_header
                _
              $region61: #{fourier_unit_forward.3} parent=51 // loop_header
                %s627 = sphi 0, %s629
                %p628 = scmp.ge.s32.totalorder %s627, %s620
                %s632 = sphi 0, %s639
                %s633 = sphi %s623, %s642
                %s634 = sphi %s625, %s643
              $region62: #{fourier_unit_forward.3} parent=51 // loop_header_branch
                %631 = sbr.rel (%p628) target = $region66
              $region63: #{fourier_unit_forward.3} parent=51 // loop_body
                %v635 = vld [vmem:[%s633] sm:$0xf]
                %636 = vst [vmem:[%s634] sm:$0xf] %v635
                %s637 = sadd.s32 1, %s632
                %p638 = scmp.ge.s32.totalorder %s637, %s620
                %s639 = scalar_select %p638, 0, %s637
                %s640 = smul.u32 %s639, 4
                %s641 = smul.u32 %s639, 4
                %s642 = scalar_lea.vmem %s623, %s640 [#allocation2]
                %s643 = scalar_lea.vmem %s625, %s641
              $region64: #{fourier_unit_forward.3} parent=51 // loop_footer
                %s629 = sadd.s32 %s627, 1
              $region65: #{fourier_unit_forward.3} parent=51 // loop_footer_branch
                %626 = sbr.rel target = $region61
              $region66: #{fourier_unit_forward.3} parent=51 // loop_exit
                _
            $region52: #{fourier_unit_forward.3} parent=43 // pred_fallthru
              _
          $region44: #{fourier_unit_forward.3} parent=39 // pred_fallthru
            _
          %721 = vnop
        $region40: #{fourier_unit_forward.3} parent=35 // pred_fallthru
          _
      $region36: #{fourier_unit_forward.3} parent=5 // pred_fallthru
        _
      %p722 = scmp.le.s32.totalorder 2, %s10
      // Predicated region
      $region85: #{fourier_unit_forward.3} parent=5 // pred_check
        %p723 = pneg %p722
      $region86: #{fourier_unit_forward.3} parent=5 // pred_check_branch
        %725 = sbr.rel (%p723) target = $region88
      $region87: #{fourier_unit_forward.3} parent=5 // pred_region
        %s726 = ssub.s32 %s10, 2
        // Predicated region
        $region89: #{fourier_unit_forward.3} parent=87 // pred_check
          %p727 = pneg %p128
        $region90: #{fourier_unit_forward.3} parent=87 // pred_check_branch
          %729 = sbr.rel (%p727) target = $region92
        $region91: #{fourier_unit_forward.3} parent=87 // pred_region
          %s730 = sand.u32 %s113, 1
          %s731 = sand.u32 %s113, 1
          %s732 = smul.addr %s731, 64
          %s733 = scalar_lea.vmem [#allocation2], %s732
        $region92: #{fourier_unit_forward.3} parent=87 // pred_fallthru
          _
      $region88: #{fourier_unit_forward.3} parent=5 // pred_fallthru
        _
    $region6: #{fourier_unit_forward.3} parent=1 // loop_footer
      %s14 = sadd.s32 1, %s10
    $region7: #{fourier_unit_forward.3} parent=1 // loop_footer_branch
      %9 = sbr.rel target = $region3
    $region8: #{fourier_unit_forward.3} parent=1 // loop_exit
      _

// kernel: fourier_unit_forward.2
$region0: #{fourier_unit_forward.2}
  #allocation0 [shape = 'u32[]', space=smem, size = 0x4, offset = 0x4, fixed_abs, tag = 'smem constant byte address 0x4 - core index']
  #allocation1 [shape = 'u32[144,128]{1,0:T(1,128)}', space=vmem, size = 0x12000, scoped, tag = 'internal scratch']
  %s0 = inlined_call_operand.vmem [shape: f32[288,128], index: 0, kind: input, shape index: {}]
  %s1 = inlined_call_operand.vmem [shape: bf16[128,128], index: 1, kind: input, shape index: {}]
  %s2 = inlined_call_operand.vmem [shape: f32[3,8,128], index: 2, kind: output, shape index: {0}]
  %s3 = inlined_call_operand.vmem [shape: f32[3,8,128], index: 3, kind: output, shape index: {1}]
  %4 = xla_tuple %s2, %s3
  %s5 = sld [smem:[#allocation0]]
  $region49: #{fourier_unit_forward.2} parent=0
    _
  %s7 = ssub.s32 1, %s5
  %s8 = scalar_select 0, %s7, %s5
  loop: start=0, step=1, limit=5
  $region2: #{fourier_unit_forward.2} parent=0 // loop_pre_header
    _
  $region3: #{fourier_unit_forward.2} parent=0 // loop_header
    %s10 = sphi 0, %s14
    %p11 = scmp.ge.s32.totalorder %s10, 5
    %s20 = sphi 0, %s22
    %s23 = sphi 0, %s20
    %s24 = sphi 0, %s23
    %s40 = sphi 0, %s24
    %s44 = sphi 0, %s44
    %s46 = sphi 0, %s44
    %s47 = sphi 0, %s46
    %s61 = sphi 0, %s47
    %s67 = sphi 0, %s69
    %s70 = sphi 0, %s67
    %s71 = sphi 0, %s70
    %s87 = sphi 0, %s71
    %s93 = sphi 0, %s95
    %s96 = sphi 0, %s93
    %s97 = sphi 0, %s96
    %s113 = sphi 0, %s97
  $region4: #{fourier_unit_forward.2} parent=0 // loop_header_branch
    %13 = sbr.rel (%p11) target = $region8
  $region5: #{fourier_unit_forward.2} parent=0 // loop_body
    %s15 = ssub.s32 %s10, 1
    %s16 = ssub.s32 %s10, 2
    %s17 = sadd.s32 %s10, 1
    %s18 = ssub.s32 %s10, %s17
    %p19 = scmp.eq.s32.totalorder %s18, 0
    %s21 = sadd.s32 %s20, 1
    %s22 = scalar_select %p19, %s20, %s21
    %p25 = pneg %p19
    %p26 = scmp.eq.s32.totalorder %s10, 2
    %p27 = por %p25, %p26
    %p28 = scmp.ne.s32.totalorder %s20, %s23
    %p29 = scmp.eq.s32.totalorder %s10, 0
    %p30 = por %p28, %p29
    %p31 = scmp.ne.s32.totalorder %s20, %s23
    %p32 = scmp.eq.s32.totalorder %s15, 2
    %p33 = por %p31, %p32
    %p34 = scmp.ne.s32.totalorder %s23, %s24
    %p35 = scmp.eq.s32.totalorder %s15, 0
    %p36 = por %p34, %p35
    %p37 = scmp.ne.s32.totalorder %s23, %s24
    %p38 = scmp.eq.s32.totalorder %s16, 2
    %p39 = por %p37, %p38
    %p41 = scmp.ne.s32.totalorder %s24, %s40
    %p42 = scmp.eq.s32.totalorder %s16, 0
    %p43 = por %p41, %p42
    %s45 = sadd.s32 %s44, 1
    %p48 = scmp.eq.s32.totalorder %s10, 2
    %p49 = scmp.ne.s32.totalorder %s44, %s46
    %p50 = scmp.eq.s32.totalorder %s10, 0
    %p51 = por %p49, %p50
    %p52 = scmp.ne.s32.totalorder %s44, %s46
    %p53 = scmp.eq.s32.totalorder %s15, 2
    %p54 = por %p52, %p53
    %p55 = scmp.ne.s32.totalorder %s46, %s47
    %p56 = scmp.eq.s32.totalorder %s15, 0
    %p57 = por %p55, %p56
    %p58 = scmp.ne.s32.totalorder %s46, %s47
    %p59 = scmp.eq.s32.totalorder %s16, 2
    %p60 = por %p58, %p59
    %p62 = scmp.ne.s32.totalorder %s47, %s61
    %p63 = scmp.eq.s32.totalorder %s16, 0
    %p64 = por %p62, %p63
    %s65 = ssub.s32 %s10, %s17
    %p66 = scmp.eq.s32.totalorder %s65, 0
    %s68 = sadd.s32 %s67, 1
    %s69 = scalar_select %p66, %s67, %s68
    %p72 = pneg %p66
    %p73 = scmp.eq.s32.totalorder %s10, 2
    %p74 = por %p72, %p73
    %p75 = scmp.ne.s32.totalorder %s67, %s70
    %p76 = scmp.eq.s32.totalorder %s10, 0
    %p77 = por %p75, %p76
    %p78 = scmp.ne.s32.totalorder %s67, %s70
    %p79 = scmp.eq.s32.totalorder %s15, 2
    %p80 = por %p78, %p79
    %p81 = scmp.ne.s32.totalorder %s70, %s71
    %p82 = scmp.eq.s32.totalorder %s15, 0
    %p83 = por %p81, %p82
    %p84 = scmp.ne.s32.totalorder %s70, %s71
    %p85 = scmp.eq.s32.totalorder %s16, 2
    %p86 = por %p84, %p85
    %p88 = scmp.ne.s32.totalorder %s71, %s87
    %p89 = scmp.eq.s32.totalorder %s16, 0
    %p90 = por %p88, %p89
    %s91 = ssub.s32 %s10, %s17
    %p92 = scmp.eq.s32.totalorder %s91, 0
    %s94 = sadd.s32 %s93, 1
    %s95 = scalar_select %p92, %s93, %s94
    %p98 = pneg %p92
    %p99 = scmp.eq.s32.totalorder %s10, 2
    %p100 = por %p98, %p99
    %p101 = scmp.ne.s32.totalorder %s93, %s96
    %p102 = scmp.eq.s32.totalorder %s10, 0
    %p103 = por %p101, %p102
    %p104 = scmp.ne.s32.totalorder %s93, %s96
    %p105 = scmp.eq.s32.totalorder %s15, 2
    %p106 = por %p104, %p105
    %p107 = scmp.ne.s32.totalorder %s96, %s97
    %p108 = scmp.eq.s32.totalorder %s15, 0
    %p109 = por %p107, %p108
    %p110 = scmp.ne.s32.totalorder %s96, %s97
    %p111 = scmp.eq.s32.totalorder %s16, 2
    %p112 = por %p110, %p111
    %p114 = scmp.ne.s32.totalorder %s97, %s113
    %p115 = scmp.eq.s32.totalorder %s16, 0
    %p116 = por %p114, %p115
    %p117 = scmp.le.s32.totalorder 1, %s10
    %p118 = scmp.lt.s32.totalorder %s10, 4
    %p119 = pnand %p117, %p118
    %p120 = pneg %p119
    // Predicated region
    $region9: #{fourier_unit_forward.2} parent=5 // pred_check
      _
    $region10: #{fourier_unit_forward.2} parent=5 // pred_check_branch
      %122 = sbr.rel (%p119) target = $region12
    $region11: #{fourier_unit_forward.2} parent=5 // pred_region
      %s123 = ssub.s32 %s10, 1
      // Predicated region
      $region13: #{fourier_unit_forward.2} parent=11 // pred_check
        %p124 = pneg %p57
      $region14: #{fourier_unit_forward.2} parent=11 // pred_check_branch
        %126 = sbr.rel (%p124) target = $region16
      $region15: #{fourier_unit_forward.2} parent=11 // pred_region
        _
      $region16: #{fourier_unit_forward.2} parent=11 // pred_fallthru
        _
    $region12: #{fourier_unit_forward.2} parent=5 // pred_fallthru
      _
    %p127 = scmp.lt.s32.totalorder %s10, 3
    // Predicated region
    $region17: #{fourier_unit_forward.2} parent=5 // pred_check
      %p128 = pneg %p127
    $region18: #{fourier_unit_forward.2} parent=5 // pred_check_branch
      %130 = sbr.rel (%p128) target = $region20
    $region19: #{fourier_unit_forward.2} parent=5 // pred_region
      // Predicated region
      $region21: #{fourier_unit_forward.2} parent=19 // pred_check
        %p131 = pneg %p30
      $region22: #{fourier_unit_forward.2} parent=19 // pred_check_branch
        %133 = sbr.rel (%p131) target = $region24
      $region23: #{fourier_unit_forward.2} parent=19 // pred_region
        %s134 = smul.u32 16, %s10
        %s135 = ssub.s32 36, %s134
        %p136 = scmp.lt.s32.totalorder %s135, 16
        %s137 = scalar_select %p136, %s135, 16
        %s138 = smul.u32 128, %s137
        %p139 = scmp.lt.s32.totalorder %s134, 35
        %s140 = scalar_select %p139, %s134, 35
        %s141 = smul.addr %s140, 8
        %s142 = scalar_lea.vmem %s0, %s141
        %s143 = smul.u32 16, %s10
        %s144 = ssub.s32 36, %s143
        %p145 = scmp.lt.s32.totalorder %s144, 16
        %s146 = scalar_select %p145, %s144, 16
        %s147 = smul.u32 128, %s146
      $region24: #{fourier_unit_forward.2} parent=19 // pred_fallthru
        _
    $region20: #{fourier_unit_forward.2} parent=5 // pred_fallthru
      _
    %p148 = scmp.le.s32.totalorder 1, %s10
    %p149 = scmp.lt.s32.totalorder %s10, 4
    %p150 = pnand %p148, %p149
    %p151 = pneg %p150
    // Predicated region
    $region25: #{fourier_unit_forward.2} parent=5 // pred_check
      _
    $region26: #{fourier_unit_forward.2} parent=5 // pred_check_branch
      %153 = sbr.rel (%p150) target = $region28
    $region27: #{fourier_unit_forward.2} parent=5 // pred_region
      %s154 = ssub.s32 %s10, 1
      %s155 = smul.u32 16, %s15
      %s156 = ssub.s32 36, %s155
      %p157 = scmp.lt.s32.totalorder %s156, 16
      %s158 = scalar_select %p157, %s156, 16
      %s159 = smul.u32 128, %s158
      %p160 = scmp.lt.s32.totalorder %s155, 35
      %s161 = scalar_select %p160, %s155, 35
      %s162 = smul.addr %s161, 8
      %s163 = scalar_lea.vmem %s0, %s162
      %p164 = pneg %p36
      %p165 = pneg %p33
      %p166 = pneg %p57
      %p167 = pneg %p54
      %p168 = pneg %p83
      %p169 = pneg %p80
      %p170 = scmp.lt.s32.totalorder %s15, 2
      %s171 = scalar_select %p170, %s15, 2
      %s172 = smul.addr %s171, 8
      %s173 = scalar_lea.vmem %s2, %s172
      %p174 = pneg %p109
      %p175 = pneg %p106
      %p176 = scmp.lt.s32.totalorder %s15, 2
      %s177 = scalar_select %p176, %s15, 2
      %s178 = smul.addr %s177, 8
      %s179 = scalar_lea.vmem %s3, %s178
      %s180 = smul.u32 16, %s15
      %s181 = ssub.s32 36, %s180
      %p182 = scmp.lt.s32.totalorder %s181, 16
      %s183 = scalar_select %p182, %s181, 16
      %s184 = smul.u32 128, %s183
      %p185 = scmp.lt.s32.totalorder %s180, 35
      %s186 = scalar_select %p185, %s180, 35
      %s187 = smul.addr %s186, 8
      %s188 = scalar_lea.vmem %s0, %s187
      %s189 = smul.u32 16, %s15
      %s190 = ssub.s32 36, %s189
      %p191 = scmp.lt.s32.totalorder %s190, 16
      %s192 = scalar_select %p191, %s190, 16
      %s193 = smul.u32 128, %s192
      %p194 = scmp.lt.s32.totalorder %s15, 2
      %s195 = scalar_select %p194, %s15, 2
      %s196 = smul.addr %s195, 8
      %s197 = scalar_lea.vmem %s2, %s196
      %p198 = scmp.lt.s32.totalorder %s15, 2
      %s199 = scalar_select %p198, %s15, 2
      %s200 = smul.addr %s199, 8
      %s201 = scalar_lea.vmem %s3, %s200
      %s203 = smul.u32 %s15, 128
      %v204 = vlaneseq
      %v205 = vshrl.u32 %v204, 7
      %v206 = vadd.s32 %v205, 8
      %v207 = vadd.s32 %v205, 16
      %v208 = vadd.s32 %v205, 24
      %v209 = vadd.s32 %v205, 32
      %v210 = vadd.s32 %v205, 40
      %v211 = vadd.s32 %v205, 48
      %v212 = vadd.s32 %v205, 56
      %v213 = vadd.s32 %v205, 64
      %v214 = vadd.s32 %v205, 72
      %v215 = vadd.s32 %v205, 80
      %v216 = vadd.s32 %v205, 88
      %v217 = vadd.s32 %v205, 96
      %v218 = vadd.s32 %v205, 104
      %v219 = vadd.s32 %v205, 112
      %v220 = vadd.s32 %v205, 120
      %v221 = vstv %s203
      %v222 = vadd.s32 %v221, %v205
      %v223 = vadd.s32 %v221, %v206
      %v224 = vadd.s32 %v221, %v207
      %v225 = vadd.s32 %v221, %v208
      %v226 = vadd.s32 %v221, %v209
      %v227 = vadd.s32 %v221, %v210
      %v228 = vadd.s32 %v221, %v211
      %v229 = vadd.s32 %v221, %v212
      %v230 = vadd.s32 %v221, %v213
      %v231 = vadd.s32 %v221, %v214
      %v232 = vadd.s32 %v221, %v215
      %v233 = vadd.s32 %v221, %v216
      %v234 = vadd.s32 %v221, %v217
      %v235 = vadd.s32 %v221, %v218
      %v236 = vadd.s32 %v221, %v219
      %v237 = vadd.s32 %v221, %v220
      %vm238 = vcmp.lt.s32.totalorder %v222, 288
      %vm239 = vcmp.lt.s32.totalorder %v223, 288
      %vm240 = vcmp.lt.s32.totalorder %v224, 288
      %vm241 = vcmp.lt.s32.totalorder %v225, 288
      %vm242 = vcmp.lt.s32.totalorder %v226, 288
      %vm243 = vcmp.lt.s32.totalorder %v227, 288
      %vm244 = vcmp.lt.s32.totalorder %v228, 288
      %vm245 = vcmp.lt.s32.totalorder %v229, 288
      %vm246 = vcmp.lt.s32.totalorder %v230, 288
      %vm247 = vcmp.lt.s32.totalorder %v231, 288
      %vm248 = vcmp.lt.s32.totalorder %v232, 288
      %vm249 = vcmp.lt.s32.totalorder %v233, 288
      %vm250 = vcmp.lt.s32.totalorder %v234, 288
      %vm251 = vcmp.lt.s32.totalorder %v235, 288
      %vm252 = vcmp.lt.s32.totalorder %v236, 288
      %vm253 = vcmp.lt.s32.totalorder %v237, 288
      %v254 = vld [vmem:[%s188] sm:$0xff]
      %v255 = vld [vmem:[%s188 + $0x8] sm:$0xff]
      %v256 = vld [vmem:[%s188 + $0x10] sm:$0xff]
      %v257 = vld [vmem:[%s188 + $0x18] sm:$0xff]
      %v258 = vld [vmem:[%s188 + $0x20] sm:$0xff]
      %v259 = vld [vmem:[%s188 + $0x28] sm:$0xff]
      %v260 = vld [vmem:[%s188 + $0x30] sm:$0xff]
      %v261 = vld [vmem:[%s188 + $0x38] sm:$0xff]
      %v262 = vld [vmem:[%s188 + $0x40] sm:$0xff]
      %v263 = vld [vmem:[%s188 + $0x48] sm:$0xff]
      %v264 = vld [vmem:[%s188 + $0x50] sm:$0xff]
      %v265 = vld [vmem:[%s188 + $0x58] sm:$0xff]
      %v266 = vld [vmem:[%s188 + $0x60] sm:$0xff]
      %v267 = vld [vmem:[%s188 + $0x68] sm:$0xff]
      %v268 = vld [vmem:[%s188 + $0x70] sm:$0xff]
      %v269 = vld [vmem:[%s188 + $0x78] sm:$0xff]
      %v270 = vsel %vm238, %v254, 0.0
      %v271 = vsel %vm239, %v255, 0.0
      %v272 = vsel %vm240, %v256, 0.0
      %v273 = vsel %vm241, %v257, 0.0
      %v274 = vsel %vm242, %v258, 0.0
      %v275 = vsel %vm243, %v259, 0.0
      %v276 = vsel %vm244, %v260, 0.0
      %v277 = vsel %vm245, %v261, 0.0
      %v278 = vsel %vm246, %v262, 0.0
      %v279 = vsel %vm247, %v263, 0.0
      %v280 = vsel %vm248, %v264, 0.0
      %v281 = vsel %vm249, %v265, 0.0
      %v282 = vsel %vm250, %v266, 0.0
      %v283 = vsel %vm251, %v267, 0.0
      %v284 = vsel %vm252, %v268, 0.0
      %v285 = vsel %vm253, %v269, 0.0
      %v286 = vpack.c.bf16 %v271, %v270
      %v287 = vpack.c.bf16 %v273, %v272
      %v288 = vpack.c.bf16 %v275, %v274
      %v289 = vpack.c.bf16 %v277, %v276
      %v290 = vpack.c.bf16 %v279, %v278
      %v291 = vpack.c.bf16 %v281, %v280
      %v292 = vpack.c.bf16 %v283, %v282
      %v293 = vpack.c.bf16 %v285, %v284
      %v294 = vld [vmem:[%s1] sm:$0xf]
      %v295 = vld [vmem:[%s1 + $0x4] sm:$0xf]
      %v296 = vld [vmem:[%s1 + $0x8] sm:$0xf]
      %v297 = vld [vmem:[%s1 + $0xc] sm:$0xf]
      %v298 = vld [vmem:[%s1 + $0x10] sm:$0xf]
      %v299 = vld [vmem:[%s1 + $0x14] sm:$0xf]
      %v300 = vld [vmem:[%s1 + $0x18] sm:$0xf]
      %v301 = vld [vmem:[%s1 + $0x1c] sm:$0xf]
      %v302 = vld [vmem:[%s1 + $0x20] sm:$0xf]
      %v303 = vld [vmem:[%s1 + $0x24] sm:$0xf]
      %v304 = vld [vmem:[%s1 + $0x28] sm:$0xf]
      %v305 = vld [vmem:[%s1 + $0x2c] sm:$0xf]
      %v306 = vld [vmem:[%s1 + $0x30] sm:$0xf]
      %v307 = vld [vmem:[%s1 + $0x34] sm:$0xf]
      %v308 = vld [vmem:[%s1 + $0x38] sm:$0xf]
      %v309 = vld [vmem:[%s1 + $0x3c] sm:$0xf]
      %v326 = vunpack.c.l.b16 %v294
      %v327 = vunpack.c.l.b16 %v295
      %v328 = vunpack.c.l.b16 %v296
      %v329 = vunpack.c.l.b16 %v297
      %v330 = vunpack.c.l.b16 %v298
      %v331 = vunpack.c.l.b16 %v299
      %v332 = vunpack.c.l.b16 %v300
      %v333 = vunpack.c.l.b16 %v301
      %v334 = vunpack.c.l.b16 %v302
      %v335 = vunpack.c.l.b16 %v303
      %v336 = vunpack.c.l.b16 %v304
      %v337 = vunpack.c.l.b16 %v305
      %v338 = vunpack.c.l.b16 %v306
      %v339 = vunpack.c.l.b16 %v307
      %v340 = vunpack.c.l.b16 %v308
      %v341 = vunpack.c.l.b16 %v309
      %v342 = vpack.c.b16 %v327, %v326
      %v343 = vpack.c.b16 %v329, %v328
      %v344 = vpack.c.b16 %v331, %v330
      %v345 = vpack.c.b16 %v333, %v332
      %v346 = vpack.c.b16 %v335, %v334
      %v347 = vpack.c.b16 %v337, %v336
      %v348 = vpack.c.b16 %v339, %v338
      %v349 = vpack.c.b16 %v341, %v340
      %358 = vmatprep.subr.bf16.mxu0 0
      %359 = vmatpush1.bf16.msra.mxu0 %v342
      %360 = vmatprep.subr.bf16.mxu0 0
      %361 = vmatpush1.bf16.msra.mxu0 %v343
      %362 = vmatprep.subr.bf16.mxu0 0
      %363 = vmatpush1.bf16.msra.mxu0 %v344
      %364 = vmatprep.subr.bf16.mxu0 0
      %365 = vmatpush1.bf16.msra.mxu0 %v345
      %366 = vmatprep.subr.bf16.mxu0 0
      %367 = vmatpush1.bf16.msra.mxu0 %v346
      %368 = vmatprep.subr.bf16.mxu0 0
      %369 = vmatpush1.bf16.msra.mxu0 %v347
      %370 = vmatprep.subr.bf16.mxu0 0
      %371 = vmatpush1.bf16.msra.mxu0 %v348
      %372 = vmatprep.subr.bf16.mxu0 0
      %373 = vmatpush1.bf16.msra.mxu0 %v349
      %374 = vmatprep.subr.bf16.mxu0 0
      %375 = vmatpush1.bf16.msra.mxu0 0
      %376 = vmatprep.subr.bf16.mxu0 0
      %377 = vmatpush1.bf16.msra.mxu0 0
      %378 = vmatprep.subr.bf16.mxu0 0
      %379 = vmatpush1.bf16.msra.mxu0 0
      %380 = vmatprep.subr.bf16.mxu0 0
      %381 = vmatpush1.bf16.msra.mxu0 0
      %382 = vmatprep.subr.bf16.mxu0 0
      %383 = vmatpush1.bf16.msra.mxu0 0
      %384 = vmatprep.subr.bf16.mxu0 0
      %385 = vmatpush1.bf16.msra.mxu0 0
      %386 = vmatprep.subr.bf16.mxu0 0
      %387 = vmatpush1.bf16.msra.mxu0 0
      %388 = vmatprep.subr.bf16.mxu0 0
      %389 = vmatpush1.bf16.msra.mxu0 0
      %390 = vmatprep.mubr.bf16.mxu0 0
      %391 = vmatmul.mubr.bf16.gmra.mrb[0].mxu0 %v286
      %v392 = vpop.f32.mrb[0].mxu0
      %v393 = vadd.f32 0.0, %v392
      %v394 = vpop.f32.mrb[0].mxu0
      %v395 = vpop.f32.mrb[0].mxu0
      %v396 = vadd.f32 0.0, %v395
      %v397 = vpop.f32.mrb[0].mxu0
      %398 = vmatprep.mubr.bf16.mxu0 0
      %399 = vmatmul.mubr.bf16.gmra.mrb[0].mxu0 %v287
      %v400 = vpop.f32.mrb[0].mxu0
      %v401 = vadd.f32 0.0, %v400
      %v402 = vpop.f32.mrb[0].mxu0
      %v403 = vpop.f32.mrb[0].mxu0
      %v404 = vadd.f32 0.0, %v403
      %v405 = vpop.f32.mrb[0].mxu0
      %406 = vmatprep.mubr.bf16.mxu0 0
      %407 = vmatmul.mubr.bf16.gmra.mrb[0].mxu0 %v288
      %v408 = vpop.f32.mrb[0].mxu0
      %v409 = vadd.f32 0.0, %v408
      %v410 = vpop.f32.mrb[0].mxu0
      %v411 = vpop.f32.mrb[0].mxu0
      %v412 = vadd.f32 0.0, %v411
      %v413 = vpop.f32.mrb[0].mxu0
      %414 = vmatprep.mubr.bf16.mxu0 0
      %415 = vmatmul.mubr.bf16.gmra.mrb[0].mxu0 %v289
      %v416 = vpop.f32.mrb[0].mxu0
      %v417 = vadd.f32 0.0, %v416
      %v418 = vpop.f32.mrb[0].mxu0
      %v419 = vpop.f32.mrb[0].mxu0
      %v420 = vadd.f32 0.0, %v419
      %v421 = vpop.f32.mrb[0].mxu0
      %422 = vmatprep.mubr.bf16.mxu0 0
      %423 = vmatmul.mubr.bf16.gmra.mrb[0].mxu0 %v290
      %v424 = vpop.f32.mrb[0].mxu0
      %v425 = vadd.f32 0.0, %v424
      %v426 = vpop.f32.mrb[0].mxu0
      %v427 = vpop.f32.mrb[0].mxu0
      %v428 = vadd.f32 0.0, %v427
      %v429 = vpop.f32.mrb[0].mxu0
      %430 = vmatprep.mubr.bf16.mxu0 0
      %431 = vmatmul.mubr.bf16.gmra.mrb[0].mxu0 %v291
      %v432 = vpop.f32.mrb[0].mxu0
      %v433 = vadd.f32 0.0, %v432
      %v434 = vpop.f32.mrb[0].mxu0
      %v435 = vpop.f32.mrb[0].mxu0
      %v436 = vadd.f32 0.0, %v435
      %v437 = vpop.f32.mrb[0].mxu0
      %438 = vmatprep.mubr.bf16.mxu0 0
      %439 = vmatmul.mubr.bf16.gmra.mrb[0].mxu0 %v292
      %v440 = vpop.f32.mrb[0].mxu0
      %v441 = vadd.f32 0.0, %v440
      %v442 = vpop.f32.mrb[0].mxu0
      %v443 = vpop.f32.mrb[0].mxu0
      %v444 = vadd.f32 0.0, %v443
      %v445 = vpop.f32.mrb[0].mxu0
      %446 = vmatprep.mubr.bf16.mxu0 0
      %447 = vmatmul.mubr.bf16.gmra.mrb[0].mxu0 %v293
      %v448 = vpop.f32.mrb[0].mxu0
      %v449 = vadd.f32 0.0, %v448
      %v450 = vpop.f32.mrb[0].mxu0
      %v451 = vpop.f32.mrb[0].mxu0
      %v452 = vadd.f32 0.0, %v451
      %v453 = vpop.f32.mrb[0].mxu0
      %454 = vdwg.mxu0
      %v455 = vadd.f32 %v393, %v396
      %v456 = vadd.f32 %v455, %v401
      %v457 = vadd.f32 %v456, %v404
      %v458 = vadd.f32 %v457, %v409
      %v459 = vadd.f32 %v458, %v412
      %v460 = vadd.f32 %v459, %v417
      %v461 = vadd.f32 %v460, %v420
      %v462 = vadd.f32 %v461, %v425
      %v463 = vadd.f32 %v462, %v428
      %v464 = vadd.f32 %v463, %v433
      %v465 = vadd.f32 %v464, %v436
      %v466 = vadd.f32 %v465, %v441
      %v467 = vadd.f32 %v466, %v444
      %v468 = vadd.f32 %v467, %v449
      %v469 = vadd.f32 %v468, %v452
      %v470 = vrot.slane %v469, 4
      %v471 = vadd.f32 %v469, %v470
      %v472 = vrot.slane %v471, 2
      %v473 = vadd.f32 %v471, %v472
      %v474 = vrot.slane %v473, 1
      %v475 = vadd.f32 %v473, %v474
      %v476 = vmul.f32 %v475, 0.0034722222
      %v477 = vmul.f32 %v393, %v393
      %v478 = vmul.f32 %v396, %v396
      %v479 = vmul.f32 %v401, %v401
      %v480 = vmul.f32 %v404, %v404
      %v481 = vmul.f32 %v409, %v409
      %v482 = vmul.f32 %v412, %v412
      %v483 = vmul.f32 %v417, %v417
      %v484 = vmul.f32 %v420, %v420
      %v485 = vmul.f32 %v425, %v425
      %v486 = vmul.f32 %v428, %v428
      %v487 = vmul.f32 %v433, %v433
      %v488 = vmul.f32 %v436, %v436
      %v489 = vmul.f32 %v441, %v441
      %v490 = vmul.f32 %v444, %v444
      %v491 = vmul.f32 %v449, %v449
      %v492 = vmul.f32 %v452, %v452
      %v493 = vadd.f32 %v477, %v478
      %v494 = vadd.f32 %v493, %v479
      %v495 = vadd.f32 %v494, %v480
      %v496 = vadd.f32 %v495, %v481
      %v497 = vadd.f32 %v496, %v482
      %v498 = vadd.f32 %v497, %v483
      %v499 = vadd.f32 %v498, %v484
      %v500 = vadd.f32 %v499, %v485
      %v501 = vadd.f32 %v500, %v486
      %v502 = vadd.f32 %v501, %v487
      %v503 = vadd.f32 %v502, %v488
      %v504 = vadd.f32 %v503, %v489
      %v505 = vadd.f32 %v504, %v490
      %v506 = vadd.f32 %v505, %v491
      %v507 = vadd.f32 %v506, %v492
      %v508 = vrot.slane %v507, 4
      %v509 = vadd.f32 %v507, %v508
      %v510 = vrot.slane %v509, 2
      %v511 = vadd.f32 %v509, %v510
      %v512 = vrot.slane %v511, 1
      %v513 = vadd.f32 %v511, %v512
      %v514 = vmul.f32 %v513, 0.0034722222
      %515 = vst [vmem:[%s197] sm:$0xff] %v476
      %516 = vst [vmem:[%s201] sm:$0xff] %v514
      %p517 = scmp.lt.s32.totalorder %s15, 2
      %s518 = scalar_select %p517, %s15, 2
      %s519 = smul.addr %s518, 8
      %s520 = scalar_lea.vmem %s2, %s519
      %p521 = scmp.lt.s32.totalorder %s15, 2
      %s522 = scalar_select %p521, %s15, 2
      %s523 = smul.addr %s522, 8
      %s524 = scalar_lea.vmem %s3, %s523
      // Predicated region
      $region29: #{fourier_unit_forward.2} parent=27 // pred_check
        %p525 = pneg %p80
      $region30: #{fourier_unit_forward.2} parent=27 // pred_check_branch
        %527 = sbr.rel (%p525) target = $region32
      $region31: #{fourier_unit_forward.2} parent=27 // pred_region
        _
      $region32: #{fourier_unit_forward.2} parent=27 // pred_fallthru
        _
      // Predicated region
      $region33: #{fourier_unit_forward.2} parent=27 // pred_check
        %p528 = pneg %p106
      $region34: #{fourier_unit_forward.2} parent=27 // pred_check_branch
        %530 = sbr.rel (%p528) target = $region36
      $region35: #{fourier_unit_forward.2} parent=27 // pred_region
        _
      $region36: #{fourier_unit_forward.2} parent=27 // pred_fallthru
        _
    $region28: #{fourier_unit_forward.2} parent=5 // pred_fallthru
      _
    %p531 = scmp.le.s32.totalorder 2, %s10
    // Predicated region
    $region37: #{fourier_unit_forward.2} parent=5 // pred_check
      %p532 = pneg %p531
    $region38: #{fourier_unit_forward.2} parent=5 // pred_check_branch
      %534 = sbr.rel (%p532) target = $region40
    $region39: #{fourier_unit_forward.2} parent=5 // pred_region
      %s535 = ssub.s32 %s10, 2
      // Predicated region
      $region41: #{fourier_unit_forward.2} parent=39 // pred_check
        %p536 = pneg %p86
      $region42: #{fourier_unit_forward.2} parent=39 // pred_check_branch
        %538 = sbr.rel (%p536) target = $region44
      $region43: #{fourier_unit_forward.2} parent=39 // pred_region
        %p539 = scmp.lt.s32.totalorder %s16, 2
        %s540 = scalar_select %p539, %s16, 2
        %s541 = smul.addr %s540, 8
        %s542 = scalar_lea.vmem %s2, %s541
      $region44: #{fourier_unit_forward.2} parent=39 // pred_fallthru
        _
      // Predicated region
      $region45: #{fourier_unit_forward.2} parent=39 // pred_check
        %p543 = pneg %p112
      $region46: #{fourier_unit_forward.2} parent=39 // pred_check_branch
        %545 = sbr.rel (%p543) target = $region48
      $region47: #{fourier_unit_forward.2} parent=39 // pred_region
        %p546 = scmp.lt.s32.totalorder %s16, 2
        %s547 = scalar_select %p546, %s16, 2
        %s548 = smul.addr %s547, 8
        %s549 = scalar_lea.vmem %s3, %s548
      $region48: #{fourier_unit_forward.2} parent=39 // pred_fallthru
        _
    $region40: #{fourier_unit_forward.2} parent=5 // pred_fallthru
      _
  $region6: #{fourier_unit_forward.2} parent=0 // loop_footer
    %s14 = sadd.s32 1, %s10
  $region7: #{fourier_unit_forward.2} parent=0 // loop_footer_branch
    %9 = sbr.rel target = $region3
  $region8: #{fourier_unit_forward.2} parent=0 // loop_exit
    _

</llo_original>
